<compile_context>
chip_gen: v5e
topology: v5e:2x2
jax: 0.10.0
libtpu: 0.0.40
codegen_flags: <defaults>
</compile_context>

<pallas_src>
import functools
import math

import jax
import jax.numpy as jnp
from jax.experimental import pallas as pl
from jax.experimental.pallas import tpu as pltpu

# ---- configuration (matches Imagen defaults at small synthetic shapes) ----
BATCH = 2
CHANNELS = 3            # Imagen default channels=3
IMAGE_SIZE = 16         # image_sizes=(16,) -> single base unet, no lowres conditioning
TIMESTEPS = 1000
TEXT_EMBED_DIM = 32     # text_embed_dim
SEQ = 8                 # text sequence length
HIDDEN = 32             # stand-in Unet hidden width
COND_DROP_PROB = 0.1    # classifier-free guidance dropout

# Generate N(0,1) noise on-chip when the stateful PRNG sampler is available; otherwise the
# wrapper packs jax.random.normal noise behind the image channels (one extra DMA).
_IN_KERNEL_RNG = hasattr(pltpu, "stateful_normal")


# --------------------------- noise schedule (GaussianDiffusion) ---------------------------
def cosine_beta_schedule(timesteps, s=0.008):
    steps = timesteps + 1
    x = jnp.linspace(0.0, float(timesteps), steps)
    alphas_cumprod = jnp.cos(((x / timesteps) + s) / (1 + s) * math.pi * 0.5) ** 2
    alphas_cumprod = alphas_cumprod / alphas_cumprod[0]
    betas = 1.0 - (alphas_cumprod[1:] / alphas_cumprod[:-1])
    return jnp.clip(betas, 0.0, 0.999)


# --------------------------------- the fused Pallas kernel ---------------------------------
def _imagen_p_losses_kernel(seed_ref, data_ref, pk_ref, loss_ref, *,
                            batch, channels, hidden, hw, inv_n_elems, in_kernel_rng):
    """normalize -> q_sample -> stand-in Unet -> mean squared error, whole batch resident.

    Refs:
      seed_ref : SMEM (1,) int32            PRNG seed (unused in fallback mode)
      data_ref : VMEM (C, B, HW)            images, channel-leading
                 (fallback: (2C, B, HW) with N(0,1) noise in channels C..2C-1)
      pk_ref   : VMEM (B+2C, HIDDEN+2, 1)   rows 0..B-1   : [cond_b | c0_b | c1_b]
                                            rows B..B+C-1 : w1[c, :]  (zero padded)
                                            rows B+C..    : w2[:, c]  (zero padded)
      loss_ref : SMEM (1, 1) float32
    """
    if in_kernel_rng:
        pltpu.prng_seed(seed_ref[0])

    cond = pk_ref[0:batch, 0:hidden, :]        # (B, HIDDEN, 1) time+text conditioning
    c0 = pk_ref[0:batch, hidden, :]            # (B, 1)  sqrt(alphas_cumprod[t_b])
    c1 = pk_ref[0:batch, hidden + 1, :]        # (B, 1)  sqrt(1 - alphas_cumprod[t_b])

    # ---- normalize + q_sample + 1x1 conv #1 (VPU broadcast-FMAs, per-channel slabs) ----
    noises = []
    h = None
    for c in range(channels):
        x_c = data_ref[c]                                       # (B, HW) aligned slab
        if in_kernel_rng:
            noise_c = pltpu.stateful_normal((batch, hw), jnp.float32)
        else:
            noise_c = data_ref[channels + c]                    # (B, HW)
        noises.append(noise_c)
        # normalize_neg_one_to_one + GaussianDiffusion.q_sample, lane-dense VPU pass
        xn_c = c0 * (x_c * 2.0 - 1.0) + c1 * noise_c            # (B, HW)
        w1_c = pk_ref[batch + c, 0:hidden, :]                   # (HIDDEN, 1)
        term = w1_c * xn_c[:, None, :]                          # -> (B, HIDDEN, HW)
        h = term if h is None else h + term

    h = jax.nn.gelu(h + cond, approximate=True)                 # (B, HIDDEN, HW)

    # ---- 1x1 conv #2 + squared error: vector accumulator, ONE final reduction ----
    sq = None
    for c in range(channels):
        w2t_c = pk_ref[batch + channels + c, 0:hidden, :]       # (HIDDEN, 1)
        pred_c = jnp.sum(w2t_c * h, axis=1)                     # (B, HW) sublane reduce
        d = pred_c - noises[c]
        sq = d * d if sq is None else sq + d * d                # (B, HW) accumulator

    # mse_loss(reduction='mean') over all B*C*HW elements -> scalar to SMEM
    loss_ref[0, 0] = jnp.sum(sq) * inv_n_elems


# ------------------------------------- JAX glue / wrapper -------------------------------------
def init_params(key):
    k1, k2, k3, k4 = jax.random.split(key, 4)
    scale = 0.1
    return {
        "w1": jax.random.normal(k1, (CHANNELS, HIDDEN), jnp.float32) * scale,
        "w2": jax.random.normal(k2, (HIDDEN, CHANNELS), jnp.float32) * scale,
        "w_time": jax.random.normal(k3, (HIDDEN, HIDDEN), jnp.float32) * scale,
        "w_text": jax.random.normal(k4, (TEXT_EMBED_DIM, HIDDEN), jnp.float32) * scale,
    }


def _build_conditioning(times, text_embeds, text_mask, params, drop_key):
    # sinusoidal timestep embedding
    half = HIDDEN // 2
    freqs = jnp.exp(-math.log(10000.0) * jnp.arange(half, dtype=jnp.float32) / half)
    args = times.astype(jnp.float32)[:, None] * freqs[None, :]
    t_emb = jnp.concatenate([jnp.sin(args), jnp.cos(args)], axis=-1)        # (B, HIDDEN)

    # masked mean pool of text embeddings (stand-in for cross-attention conditioning)
    m = text_mask.astype(jnp.float32)[..., None]                            # (B, S, 1)
    pooled = jnp.sum(text_embeds * m, axis=1) / jnp.maximum(jnp.sum(m, axis=1), 1.0)

    # classifier-free guidance conditioning dropout (cond_drop_prob)
    keep = (jax.random.uniform(drop_key, (text_embeds.shape[0], 1)) >= COND_DROP_PROB)
    text_cond = (pooled @ params["w_text"]) * keep.astype(jnp.float32)

    return t_emb @ params["w_time"] + text_cond                             # (B, HIDDEN)


def imagen_forward(images_nchw, text_embeds, text_mask, params, key, *,
                   in_kernel_rng=_IN_KERNEL_RNG):
    """Equivalent of Imagen.forward(images, text_embeds=..., text_masks=...) -> scalar loss."""
    b, c, hgt, wid = images_nchw.shape
    assert c == CHANNELS and hgt == IMAGE_SIZE and wid == IMAGE_SIZE
    hw = hgt * wid

    k_t, k_n, k_drop = jax.random.split(key, 3)

    # noise scheduler tables (GaussianDiffusion, cosine schedule)
    betas = cosine_beta_schedule(TIMESTEPS)
    alphas_cumprod = jnp.cumprod(1.0 - betas)
    sqrt_acp = jnp.sqrt(alphas_cumprod)
    sqrt_one_minus_acp = jnp.sqrt(1.0 - alphas_cumprod)

    # _sample_random_times
    times = jax.random.randint(k_t, (b,), 0, TIMESTEPS)
    c0 = sqrt_acp[times].astype(jnp.float32)[:, None]          # (B, 1)
    c1 = sqrt_one_minus_acp[times].astype(jnp.float32)[:, None] # (B, 1)

    # channel-leading layout (C, B, HW): each per-channel slab is an aligned (B, HW) tile.
    # (resize_image_to is identity at target size)
    x = jnp.transpose(images_nchw, (1, 0, 2, 3)).reshape(c, b, hw).astype(jnp.float32)

    cond = _build_conditioning(times, text_embeds, text_mask, params, k_drop)  # (B, HIDDEN)

    # ---- single packed parameter/conditioning block: ONE small VMEM DMA ----
    cc = jnp.concatenate([cond, c0, c1], axis=1)                 # (B, HIDDEN+2)
    w1p = jnp.pad(params["w1"], ((0, 0), (0, 2)))                # (C, HIDDEN+2)
    w2tp = jnp.pad(params["w2"].T, ((0, 0), (0, 2)))             # (C, HIDDEN+2)
    pk = jnp.concatenate([cc, w1p, w2tp], axis=0)[:, :, None]    # (B+2C, HIDDEN+2, 1)

    if in_kernel_rng:
        data = x                                                 # (C, B, HW)
        seed = jax.random.randint(k_n, (1,), 0, jnp.iinfo(jnp.int32).max, dtype=jnp.int32)
    else:
        # fallback: host-side noise packed behind the image channels (still one DMA)
        noise = jax.random.normal(k_n, (c, b, hw), dtype=jnp.float32)
        data = jnp.concatenate([x, noise], axis=0)               # (2C, B, HW)
        seed = jnp.zeros((1,), jnp.int32)

    kernel = functools.partial(
        _imagen_p_losses_kernel,
        batch=b, channels=c, hidden=HIDDEN, hw=hw,
        inv_n_elems=1.0 / float(b * c * hw),
        in_kernel_rng=in_kernel_rng)

    # single program, whole (tiny) problem resident in VMEM: no grid, no pipelining.
    loss = pl.pallas_call(
        kernel,
        out_shape=jax.ShapeDtypeStruct((1, 1), jnp.float32),
        in_specs=[
            pl.BlockSpec(memory_space=pltpu.MemorySpace.SMEM),   # seed
            pl.BlockSpec(memory_space=pltpu.MemorySpace.VMEM),   # data
            pl.BlockSpec(memory_space=pltpu.MemorySpace.VMEM),   # packed cond/coef/weights
        ],
        out_specs=pl.BlockSpec(memory_space=pltpu.MemorySpace.SMEM),
    )(seed, data, pk)

    return loss[0, 0]


if __name__ == "__main__":
    root = jax.random.PRNGKey(0)
    k_img, k_txt, k_param, k_fwd = jax.random.split(root, 4)

    # raw images in [0, 1], NCHW like the PyTorch module expects
    images = jax.random.uniform(k_img, (BATCH, CHANNELS, IMAGE_SIZE, IMAGE_SIZE),
                                dtype=jnp.float32)
    # precomputed text embeddings + mask (stand-in for t5_encode_text output)
    text_embeds = jax.random.normal(k_txt, (BATCH, SEQ, TEXT_EMBED_DIM), dtype=jnp.float32)
    text_masks = jnp.arange(SEQ)[None, :] < jnp.array([SEQ, 5])[:, None]   # (B, SEQ) bool

    params = init_params(k_param)

    def run(in_kernel_rng):
        fwd = functools.partial(imagen_forward, in_kernel_rng=in_kernel_rng)
        out = jax.jit(fwd)(images, text_embeds, text_masks, params, k_fwd)
        return jax.block_until_ready(out)

    try:
        loss = run(_IN_KERNEL_RNG)
    except Exception:
        # safety net: if in-kernel stateful PRNG is unavailable/unsupported on this
        # toolchain, fall back to host-side noise (same kernel, extra data channels).
        loss = run(False)

    assert loss.shape == () and bool(jnp.isfinite(loss))
    print("KERNEL_OK")
</pallas_src>

<mosaic_0001>
module attributes {stable_mosaic.version = 11 : i64} {
  func.func @_imagen_p_losses_kernel(%arg0: memref<1xi32, #tpu.memory_space<smem>>, %arg1: memref<3x2x256xf32, #tpu.memory_space<vmem>>, %arg2: memref<8x34x1xf32, #tpu.memory_space<vmem>>, %arg3: memref<1x1xf32, #tpu.memory_space<smem>>) attributes {dimension_semantics = [], scalar_prefetch = 0 : i64, scratch_operands = 0 : i64, tpu.core_type = #tpu.core_type<tc>} {
    %c0 = arith.constant 0 : index
    %0 = memref.load %arg0[%c0] : memref<1xi32, #tpu.memory_space<smem>>
    "tpu.prng_set_seed_32"(%0) : (i32) -> ()
    %c0_0 = arith.constant 0 : index
    %c0_1 = arith.constant 0 : index
    %c0_2 = arith.constant 0 : index
    %1 = vector.load %arg2[%c0_0, %c0_1, %c0_2] : memref<8x34x1xf32, #tpu.memory_space<vmem>>, vector<2x32x1xf32>
    %c0_3 = arith.constant 0 : index
    %c32 = arith.constant 32 : index
    %c0_4 = arith.constant 0 : index
    %2 = vector.load %arg2[%c0_3, %c32, %c0_4] : memref<8x34x1xf32, #tpu.memory_space<vmem>>, vector<2x1x1xf32>
    %3 = vector.shape_cast %2 : vector<2x1x1xf32> to vector<2x1xf32>
    %c0_5 = arith.constant 0 : index
    %c33 = arith.constant 33 : index
    %c0_6 = arith.constant 0 : index
    %4 = vector.load %arg2[%c0_5, %c33, %c0_6] : memref<8x34x1xf32, #tpu.memory_space<vmem>>, vector<2x1x1xf32>
    %5 = vector.shape_cast %4 : vector<2x1x1xf32> to vector<2x1xf32>
    %c0_7 = arith.constant 0 : index
    %c0_8 = arith.constant 0 : index
    %c0_9 = arith.constant 0 : index
    %6 = vector.load %arg1[%c0_7, %c0_8, %c0_9] : memref<3x2x256xf32, #tpu.memory_space<vmem>>, vector<1x2x256xf32>
    %7 = vector.shape_cast %6 : vector<1x2x256xf32> to vector<2x256xf32>
    %c0_i32 = arith.constant 0 : i32
    %c0_i32_10 = arith.constant 0 : i32
    %cst = arith.constant -0.99999994 : f32
    %cst_11 = arith.constant 1.000000e+00 : f32
    %8 = vector.broadcast %cst : f32 to vector<1x1xf32>
    %9 = vector.broadcast %cst_11 : f32 to vector<1x1xf32>
    %10 = "tpu.prng_random_bits"() : () -> vector<2x256xi32>
    %c9_i32 = arith.constant 9 : i32
    %11 = vector.broadcast %c9_i32 : i32 to vector<2x256xi32>
    %12 = arith.shrui %10, %11 : vector<2x256xi32>
    %c1065353216_i32 = arith.constant 1065353216 : i32
    %13 = vector.broadcast %c1065353216_i32 : i32 to vector<2x256xi32>
    %14 = arith.ori %12, %13 : vector<2x256xi32>
    %15 = tpu.bitcast %14 : vector<2x256xi32> -> vector<2x256xf32>
    %cst_12 = arith.constant 1.000000e+00 : f32
    %16 = vector.broadcast %cst_12 : f32 to vector<2x256xf32>
    %17 = arith.subf %15, %16 : vector<2x256xf32>
    %18 = arith.subf %9, %8 : vector<1x1xf32>
    %19 = vector.broadcast %18 : vector<1x1xf32> to vector<2x256xf32>
    %20 = arith.mulf %17, %19 : vector<2x256xf32>
    %21 = vector.broadcast %8 : vector<1x1xf32> to vector<2x256xf32>
    %22 = arith.addf %20, %21 : vector<2x256xf32>
    %23 = vector.broadcast %8 : vector<1x1xf32> to vector<2x256xf32>
    %24 = arith.maximumf %23, %22 : vector<2x256xf32>
    %cst_13 = arith.constant 0.000000e+00 : f32
    %25 = vector.broadcast %cst_13 : f32 to vector<2x256xf32>
    %26 = arith.subf %25, %24 : vector<2x256xf32>
    %27 = arith.mulf %24, %26 : vector<2x256xf32>
    %28 = math.log1p %27 : vector<2x256xf32>
    %cst_14 = arith.constant 0.000000e+00 : f32
    %29 = vector.broadcast %cst_14 : f32 to vector<2x256xf32>
    %30 = arith.subf %29, %28 : vector<2x256xf32>
    %cst_15 = arith.constant 5.000000e+00 : f32
    %31 = vector.broadcast %cst_15 : f32 to vector<2x256xf32>
    %32 = arith.cmpf olt, %30, %31 : vector<2x256xf32>
    %cst_16 = arith.constant 2.500000e+00 : f32
    %33 = vector.broadcast %cst_16 : f32 to vector<2x256xf32>
    %34 = arith.subf %30, %33 : vector<2x256xf32>
    %35 = math.sqrt %30 : vector<2x256xf32>
    %cst_17 = arith.constant 3.000000e+00 : f32
    %36 = vector.broadcast %cst_17 : f32 to vector<2x256xf32>
    %37 = arith.subf %35, %36 : vector<2x256xf32>
    %38 = arith.select %32, %34, %37 : vector<2x256xi1>, vector<2x256xf32>
    %cst_18 = arith.constant 2.81022636E-8 : f32
    %cst_19 = arith.constant -2.00214257E-4 : f32
    %39 = vector.broadcast %cst_18 : f32 to vector<2x256xf32>
    %40 = vector.broadcast %cst_19 : f32 to vector<2x256xf32>
    %41 = arith.select %32, %39, %40 : vector<2x256xi1>, vector<2x256xf32>
    %cst_20 = arith.constant 3.43273939E-7 : f32
    %cst_21 = arith.constant 1.00950558E-4 : f32
    %42 = vector.broadcast %cst_20 : f32 to vector<2x256xf32>
    %43 = vector.broadcast %cst_21 : f32 to vector<2x256xf32>
    %44 = arith.select %32, %42, %43 : vector<2x256xi1>, vector<2x256xf32>
    %45 = arith.mulf %41, %38 : vector<2x256xf32>
    %46 = arith.addf %44, %45 : vector<2x256xf32>
    %cst_22 = arith.constant -3.5233877E-6 : f32
    %cst_23 = arith.constant 0.00134934322 : f32
    %47 = vector.broadcast %cst_22 : f32 to vector<2x256xf32>
    %48 = vector.broadcast %cst_23 : f32 to vector<2x256xf32>
    %49 = arith.select %32, %47, %48 : vector<2x256xi1>, vector<2x256xf32>
    %50 = arith.mulf %46, %38 : vector<2x256xf32>
    %51 = arith.addf %49, %50 : vector<2x256xf32>
    %cst_24 = arith.constant -4.39150654E-6 : f32
    %cst_25 = arith.constant -0.00367342844 : f32
    %52 = vector.broadcast %cst_24 : f32 to vector<2x256xf32>
    %53 = vector.broadcast %cst_25 : f32 to vector<2x256xf32>
    %54 = arith.select %32, %52, %53 : vector<2x256xi1>, vector<2x256xf32>
    %55 = arith.mulf %51, %38 : vector<2x256xf32>
    %56 = arith.addf %54, %55 : vector<2x256xf32>
    %cst_26 = arith.constant 2.1858087E-4 : f32
    %cst_27 = arith.constant 0.00573950773 : f32
    %57 = vector.broadcast %cst_26 : f32 to vector<2x256xf32>
    %58 = vector.broadcast %cst_27 : f32 to vector<2x256xf32>
    %59 = arith.select %32, %57, %58 : vector<2x256xi1>, vector<2x256xf32>
    %60 = arith.mulf %56, %38 : vector<2x256xf32>
    %61 = arith.addf %59, %60 : vector<2x256xf32>
    %cst_28 = arith.constant -0.00125372503 : f32
    %cst_29 = arith.constant -0.0076224613 : f32
    %62 = vector.broadcast %cst_28 : f32 to vector<2x256xf32>
    %63 = vector.broadcast %cst_29 : f32 to vector<2x256xf32>
    %64 = arith.select %32, %62, %63 : vector<2x256xi1>, vector<2x256xf32>
    %65 = arith.mulf %61, %38 : vector<2x256xf32>
    %66 = arith.addf %64, %65 : vector<2x256xf32>
    %cst_30 = arith.constant -0.00417768164 : f32
    %cst_31 = arith.constant 0.00943887047 : f32
    %67 = vector.broadcast %cst_30 : f32 to vector<2x256xf32>
    %68 = vector.broadcast %cst_31 : f32 to vector<2x256xf32>
    %69 = arith.select %32, %67, %68 : vector<2x256xi1>, vector<2x256xf32>
    %70 = arith.mulf %66, %38 : vector<2x256xf32>
    %71 = arith.addf %69, %70 : vector<2x256xf32>
    %cst_32 = arith.constant 0.246640727 : f32
    %cst_33 = arith.constant 1.00167406 : f32
    %72 = vector.broadcast %cst_32 : f32 to vector<2x256xf32>
    %73 = vector.broadcast %cst_33 : f32 to vector<2x256xf32>
    %74 = arith.select %32, %72, %73 : vector<2x256xi1>, vector<2x256xf32>
    %75 = arith.mulf %71, %38 : vector<2x256xf32>
    %76 = arith.addf %74, %75 : vector<2x256xf32>
    %cst_34 = arith.constant 1.50140941 : f32
    %cst_35 = arith.constant 2.83297682 : f32
    %77 = vector.broadcast %cst_34 : f32 to vector<2x256xf32>
    %78 = vector.broadcast %cst_35 : f32 to vector<2x256xf32>
    %79 = arith.select %32, %77, %78 : vector<2x256xi1>, vector<2x256xf32>
    %80 = arith.mulf %76, %38 : vector<2x256xf32>
    %81 = arith.addf %79, %80 : vector<2x256xf32>
    %82 = math.absf %24 : vector<2x256xf32>
    %cst_36 = arith.constant 1.000000e+00 : f32
    %83 = vector.broadcast %cst_36 : f32 to vector<2x256xf32>
    %84 = arith.cmpf oeq, %82, %83 : vector<2x256xf32>
    %cst_37 = arith.constant 0x7F800000 : f32
    %85 = vector.broadcast %cst_37 : f32 to vector<2x256xf32>
    %86 = arith.mulf %85, %24 : vector<2x256xf32>
    %87 = arith.mulf %81, %24 : vector<2x256xf32>
    %88 = arith.select %84, %86, %87 : vector<2x256xi1>, vector<2x256xf32>
    %cst_38 = arith.constant 1.41421354 : f32
    %89 = vector.broadcast %cst_38 : f32 to vector<2x256xf32>
    %90 = arith.mulf %89, %88 : vector<2x256xf32>
    %cst_39 = arith.constant 2.000000e+00 : f32
    %91 = vector.broadcast %cst_39 : f32 to vector<2x256xf32>
    %92 = arith.mulf %7, %91 : vector<2x256xf32>
    %cst_40 = arith.constant 1.000000e+00 : f32
    %93 = vector.broadcast %cst_40 : f32 to vector<2x256xf32>
    %94 = arith.subf %92, %93 : vector<2x256xf32>
    %95 = vector.broadcast %3 : vector<2x1xf32> to vector<2x256xf32>
    %96 = arith.mulf %95, %94 : vector<2x256xf32>
    %97 = vector.broadcast %5 : vector<2x1xf32> to vector<2x256xf32>
    %98 = arith.mulf %97, %90 : vector<2x256xf32>
    %99 = arith.addf %96, %98 : vector<2x256xf32>
    %c2 = arith.constant 2 : index
    %c0_41 = arith.constant 0 : index
    %c0_42 = arith.constant 0 : index
    %100 = vector.load %arg2[%c2, %c0_41, %c0_42] : memref<8x34x1xf32, #tpu.memory_space<vmem>>, vector<1x32x1xf32>
    %101 = vector.shape_cast %100 : vector<1x32x1xf32> to vector<32x1xf32>
    %102 = vector.shape_cast %99 : vector<2x256xf32> to vector<2x1x256xf32>
    %103 = vector.shape_cast %101 : vector<32x1xf32> to vector<1x32x1xf32>
    %104 = vector.broadcast %103 : vector<1x32x1xf32> to vector<2x32x256xf32>
    %105 = vector.broadcast %102 : vector<2x1x256xf32> to vector<2x32x256xf32>
    %106 = arith.mulf %104, %105 : vector<2x32x256xf32>
    %c1 = arith.constant 1 : index
    %c0_43 = arith.constant 0 : index
    %c0_44 = arith.constant 0 : index
    %107 = vector.load %arg1[%c1, %c0_43, %c0_44] : memref<3x2x256xf32, #tpu.memory_space<vmem>>, vector<1x2x256xf32>
    %108 = vector.shape_cast %107 : vector<1x2x256xf32> to vector<2x256xf32>
    %c0_i32_45 = arith.constant 0 : i32
    %c0_i32_46 = arith.constant 0 : i32
    %cst_47 = arith.constant -0.99999994 : f32
    %cst_48 = arith.constant 1.000000e+00 : f32
    %109 = vector.broadcast %cst_47 : f32 to vector<1x1xf32>
    %110 = vector.broadcast %cst_48 : f32 to vector<1x1xf32>
    %111 = "tpu.prng_random_bits"() : () -> vector<2x256xi32>
    %c9_i32_49 = arith.constant 9 : i32
    %112 = vector.broadcast %c9_i32_49 : i32 to vector<2x256xi32>
    %113 = arith.shrui %111, %112 : vector<2x256xi32>
    %c1065353216_i32_50 = arith.constant 1065353216 : i32
    %114 = vector.broadcast %c1065353216_i32_50 : i32 to vector<2x256xi32>
    %115 = arith.ori %113, %114 : vector<2x256xi32>
    %116 = tpu.bitcast %115 : vector<2x256xi32> -> vector<2x256xf32>
    %cst_51 = arith.constant 1.000000e+00 : f32
    %117 = vector.broadcast %cst_51 : f32 to vector<2x256xf32>
    %118 = arith.subf %116, %117 : vector<2x256xf32>
    %119 = arith.subf %110, %109 : vector<1x1xf32>
    %120 = vector.broadcast %119 : vector<1x1xf32> to vector<2x256xf32>
    %121 = arith.mulf %118, %120 : vector<2x256xf32>
    %122 = vector.broadcast %109 : vector<1x1xf32> to vector<2x256xf32>
    %123 = arith.addf %121, %122 : vector<2x256xf32>
    %124 = vector.broadcast %109 : vector<1x1xf32> to vector<2x256xf32>
    %125 = arith.maximumf %124, %123 : vector<2x256xf32>
    %cst_52 = arith.constant 0.000000e+00 : f32
    %126 = vector.broadcast %cst_52 : f32 to vector<2x256xf32>
    %127 = arith.subf %126, %125 : vector<2x256xf32>
    %128 = arith.mulf %125, %127 : vector<2x256xf32>
    %129 = math.log1p %128 : vector<2x256xf32>
    %cst_53 = arith.constant 0.000000e+00 : f32
    %130 = vector.broadcast %cst_53 : f32 to vector<2x256xf32>
    %131 = arith.subf %130, %129 : vector<2x256xf32>
    %cst_54 = arith.constant 5.000000e+00 : f32
    %132 = vector.broadcast %cst_54 : f32 to vector<2x256xf32>
    %133 = arith.cmpf olt, %131, %132 : vector<2x256xf32>
    %cst_55 = arith.constant 2.500000e+00 : f32
    %134 = vector.broadcast %cst_55 : f32 to vector<2x256xf32>
    %135 = arith.subf %131, %134 : vector<2x256xf32>
    %136 = math.sqrt %131 : vector<2x256xf32>
    %cst_56 = arith.constant 3.000000e+00 : f32
    %137 = vector.broadcast %cst_56 : f32 to vector<2x256xf32>
    %138 = arith.subf %136, %137 : vector<2x256xf32>
    %139 = arith.select %133, %135, %138 : vector<2x256xi1>, vector<2x256xf32>
    %cst_57 = arith.constant 2.81022636E-8 : f32
    %cst_58 = arith.constant -2.00214257E-4 : f32
    %140 = vector.broadcast %cst_57 : f32 to vector<2x256xf32>
    %141 = vector.broadcast %cst_58 : f32 to vector<2x256xf32>
    %142 = arith.select %133, %140, %141 : vector<2x256xi1>, vector<2x256xf32>
    %cst_59 = arith.constant 3.43273939E-7 : f32
    %cst_60 = arith.constant 1.00950558E-4 : f32
    %143 = vector.broadcast %cst_59 : f32 to vector<2x256xf32>
    %144 = vector.broadcast %cst_60 : f32 to vector<2x256xf32>
    %145 = arith.select %133, %143, %144 : vector<2x256xi1>, vector<2x256xf32>
    %146 = arith.mulf %142, %139 : vector<2x256xf32>
    %147 = arith.addf %145, %146 : vector<2x256xf32>
    %cst_61 = arith.constant -3.5233877E-6 : f32
    %cst_62 = arith.constant 0.00134934322 : f32
    %148 = vector.broadcast %cst_61 : f32 to vector<2x256xf32>
    %149 = vector.broadcast %cst_62 : f32 to vector<2x256xf32>
    %150 = arith.select %133, %148, %149 : vector<2x256xi1>, vector<2x256xf32>
    %151 = arith.mulf %147, %139 : vector<2x256xf32>
    %152 = arith.addf %150, %151 : vector<2x256xf32>
    %cst_63 = arith.constant -4.39150654E-6 : f32
    %cst_64 = arith.constant -0.00367342844 : f32
    %153 = vector.broadcast %cst_63 : f32 to vector<2x256xf32>
    %154 = vector.broadcast %cst_64 : f32 to vector<2x256xf32>
    %155 = arith.select %133, %153, %154 : vector<2x256xi1>, vector<2x256xf32>
    %156 = arith.mulf %152, %139 : vector<2x256xf32>
    %157 = arith.addf %155, %156 : vector<2x256xf32>
    %cst_65 = arith.constant 2.1858087E-4 : f32
    %cst_66 = arith.constant 0.00573950773 : f32
    %158 = vector.broadcast %cst_65 : f32 to vector<2x256xf32>
    %159 = vector.broadcast %cst_66 : f32 to vector<2x256xf32>
    %160 = arith.select %133, %158, %159 : vector<2x256xi1>, vector<2x256xf32>
    %161 = arith.mulf %157, %139 : vector<2x256xf32>
    %162 = arith.addf %160, %161 : vector<2x256xf32>
    %cst_67 = arith.constant -0.00125372503 : f32
    %cst_68 = arith.constant -0.0076224613 : f32
    %163 = vector.broadcast %cst_67 : f32 to vector<2x256xf32>
    %164 = vector.broadcast %cst_68 : f32 to vector<2x256xf32>
    %165 = arith.select %133, %163, %164 : vector<2x256xi1>, vector<2x256xf32>
    %166 = arith.mulf %162, %139 : vector<2x256xf32>
    %167 = arith.addf %165, %166 : vector<2x256xf32>
    %cst_69 = arith.constant -0.00417768164 : f32
    %cst_70 = arith.constant 0.00943887047 : f32
    %168 = vector.broadcast %cst_69 : f32 to vector<2x256xf32>
    %169 = vector.broadcast %cst_70 : f32 to vector<2x256xf32>
    %170 = arith.select %133, %168, %169 : vector<2x256xi1>, vector<2x256xf32>
    %171 = arith.mulf %167, %139 : vector<2x256xf32>
    %172 = arith.addf %170, %171 : vector<2x256xf32>
    %cst_71 = arith.constant 0.246640727 : f32
    %cst_72 = arith.constant 1.00167406 : f32
    %173 = vector.broadcast %cst_71 : f32 to vector<2x256xf32>
    %174 = vector.broadcast %cst_72 : f32 to vector<2x256xf32>
    %175 = arith.select %133, %173, %174 : vector<2x256xi1>, vector<2x256xf32>
    %176 = arith.mulf %172, %139 : vector<2x256xf32>
    %177 = arith.addf %175, %176 : vector<2x256xf32>
    %cst_73 = arith.constant 1.50140941 : f32
    %cst_74 = arith.constant 2.83297682 : f32
    %178 = vector.broadcast %cst_73 : f32 to vector<2x256xf32>
    %179 = vector.broadcast %cst_74 : f32 to vector<2x256xf32>
    %180 = arith.select %133, %178, %179 : vector<2x256xi1>, vector<2x256xf32>
    %181 = arith.mulf %177, %139 : vector<2x256xf32>
    %182 = arith.addf %180, %181 : vector<2x256xf32>
    %183 = math.absf %125 : vector<2x256xf32>
    %cst_75 = arith.constant 1.000000e+00 : f32
    %184 = vector.broadcast %cst_75 : f32 to vector<2x256xf32>
    %185 = arith.cmpf oeq, %183, %184 : vector<2x256xf32>
    %cst_76 = arith.constant 0x7F800000 : f32
    %186 = vector.broadcast %cst_76 : f32 to vector<2x256xf32>
    %187 = arith.mulf %186, %125 : vector<2x256xf32>
    %188 = arith.mulf %182, %125 : vector<2x256xf32>
    %189 = arith.select %185, %187, %188 : vector<2x256xi1>, vector<2x256xf32>
    %cst_77 = arith.constant 1.41421354 : f32
    %190 = vector.broadcast %cst_77 : f32 to vector<2x256xf32>
    %191 = arith.mulf %190, %189 : vector<2x256xf32>
    %cst_78 = arith.constant 2.000000e+00 : f32
    %192 = vector.broadcast %cst_78 : f32 to vector<2x256xf32>
    %193 = arith.mulf %108, %192 : vector<2x256xf32>
    %cst_79 = arith.constant 1.000000e+00 : f32
    %194 = vector.broadcast %cst_79 : f32 to vector<2x256xf32>
    %195 = arith.subf %193, %194 : vector<2x256xf32>
    %196 = vector.broadcast %3 : vector<2x1xf32> to vector<2x256xf32>
    %197 = arith.mulf %196, %195 : vector<2x256xf32>
    %198 = vector.broadcast %5 : vector<2x1xf32> to vector<2x256xf32>
    %199 = arith.mulf %198, %191 : vector<2x256xf32>
    %200 = arith.addf %197, %199 : vector<2x256xf32>
    %c3 = arith.constant 3 : index
    %c0_80 = arith.constant 0 : index
    %c0_81 = arith.constant 0 : index
    %201 = vector.load %arg2[%c3, %c0_80, %c0_81] : memref<8x34x1xf32, #tpu.memory_space<vmem>>, vector<1x32x1xf32>
    %202 = vector.shape_cast %201 : vector<1x32x1xf32> to vector<32x1xf32>
    %203 = vector.shape_cast %200 : vector<2x256xf32> to vector<2x1x256xf32>
    %204 = vector.shape_cast %202 : vector<32x1xf32> to vector<1x32x1xf32>
    %205 = vector.broadcast %204 : vector<1x32x1xf32> to vector<2x32x256xf32>
    %206 = vector.broadcast %203 : vector<2x1x256xf32> to vector<2x32x256xf32>
    %207 = arith.mulf %205, %206 : vector<2x32x256xf32>
    %208 = arith.addf %106, %207 : vector<2x32x256xf32>
    %c2_82 = arith.constant 2 : index
    %c0_83 = arith.constant 0 : index
    %c0_84 = arith.constant 0 : index
    %209 = vector.load %arg1[%c2_82, %c0_83, %c0_84] : memref<3x2x256xf32, #tpu.memory_space<vmem>>, vector<1x2x256xf32>
    %210 = vector.shape_cast %209 : vector<1x2x256xf32> to vector<2x256xf32>
    %c0_i32_85 = arith.constant 0 : i32
    %c0_i32_86 = arith.constant 0 : i32
    %cst_87 = arith.constant -0.99999994 : f32
    %cst_88 = arith.constant 1.000000e+00 : f32
    %211 = vector.broadcast %cst_87 : f32 to vector<1x1xf32>
    %212 = vector.broadcast %cst_88 : f32 to vector<1x1xf32>
    %213 = "tpu.prng_random_bits"() : () -> vector<2x256xi32>
    %c9_i32_89 = arith.constant 9 : i32
    %214 = vector.broadcast %c9_i32_89 : i32 to vector<2x256xi32>
    %215 = arith.shrui %213, %214 : vector<2x256xi32>
    %c1065353216_i32_90 = arith.constant 1065353216 : i32
    %216 = vector.broadcast %c1065353216_i32_90 : i32 to vector<2x256xi32>
    %217 = arith.ori %215, %216 : vector<2x256xi32>
    %218 = tpu.bitcast %217 : vector<2x256xi32> -> vector<2x256xf32>
    %cst_91 = arith.constant 1.000000e+00 : f32
    %219 = vector.broadcast %cst_91 : f32 to vector<2x256xf32>
    %220 = arith.subf %218, %219 : vector<2x256xf32>
    %221 = arith.subf %212, %211 : vector<1x1xf32>
    %222 = vector.broadcast %221 : vector<1x1xf32> to vector<2x256xf32>
    %223 = arith.mulf %220, %222 : vector<2x256xf32>
    %224 = vector.broadcast %211 : vector<1x1xf32> to vector<2x256xf32>
    %225 = arith.addf %223, %224 : vector<2x256xf32>
    %226 = vector.broadcast %211 : vector<1x1xf32> to vector<2x256xf32>
    %227 = arith.maximumf %226, %225 : vector<2x256xf32>
    %cst_92 = arith.constant 0.000000e+00 : f32
    %228 = vector.broadcast %cst_92 : f32 to vector<2x256xf32>
    %229 = arith.subf %228, %227 : vector<2x256xf32>
    %230 = arith.mulf %227, %229 : vector<2x256xf32>
    %231 = math.log1p %230 : vector<2x256xf32>
    %cst_93 = arith.constant 0.000000e+00 : f32
    %232 = vector.broadcast %cst_93 : f32 to vector<2x256xf32>
    %233 = arith.subf %232, %231 : vector<2x256xf32>
    %cst_94 = arith.constant 5.000000e+00 : f32
    %234 = vector.broadcast %cst_94 : f32 to vector<2x256xf32>
    %235 = arith.cmpf olt, %233, %234 : vector<2x256xf32>
    %cst_95 = arith.constant 2.500000e+00 : f32
    %236 = vector.broadcast %cst_95 : f32 to vector<2x256xf32>
    %237 = arith.subf %233, %236 : vector<2x256xf32>
    %238 = math.sqrt %233 : vector<2x256xf32>
    %cst_96 = arith.constant 3.000000e+00 : f32
    %239 = vector.broadcast %cst_96 : f32 to vector<2x256xf32>
    %240 = arith.subf %238, %239 : vector<2x256xf32>
    %241 = arith.select %235, %237, %240 : vector<2x256xi1>, vector<2x256xf32>
    %cst_97 = arith.constant 2.81022636E-8 : f32
    %cst_98 = arith.constant -2.00214257E-4 : f32
    %242 = vector.broadcast %cst_97 : f32 to vector<2x256xf32>
    %243 = vector.broadcast %cst_98 : f32 to vector<2x256xf32>
    %244 = arith.select %235, %242, %243 : vector<2x256xi1>, vector<2x256xf32>
    %cst_99 = arith.constant 3.43273939E-7 : f32
    %cst_100 = arith.constant 1.00950558E-4 : f32
    %245 = vector.broadcast %cst_99 : f32 to vector<2x256xf32>
    %246 = vector.broadcast %cst_100 : f32 to vector<2x256xf32>
    %247 = arith.select %235, %245, %246 : vector<2x256xi1>, vector<2x256xf32>
    %248 = arith.mulf %244, %241 : vector<2x256xf32>
    %249 = arith.addf %247, %248 : vector<2x256xf32>
    %cst_101 = arith.constant -3.5233877E-6 : f32
    %cst_102 = arith.constant 0.00134934322 : f32
    %250 = vector.broadcast %cst_101 : f32 to vector<2x256xf32>
    %251 = vector.broadcast %cst_102 : f32 to vector<2x256xf32>
    %252 = arith.select %235, %250, %251 : vector<2x256xi1>, vector<2x256xf32>
    %253 = arith.mulf %249, %241 : vector<2x256xf32>
    %254 = arith.addf %252, %253 : vector<2x256xf32>
    %cst_103 = arith.constant -4.39150654E-6 : f32
    %cst_104 = arith.constant -0.00367342844 : f32
    %255 = vector.broadcast %cst_103 : f32 to vector<2x256xf32>
    %256 = vector.broadcast %cst_104 : f32 to vector<2x256xf32>
    %257 = arith.select %235, %255, %256 : vector<2x256xi1>, vector<2x256xf32>
    %258 = arith.mulf %254, %241 : vector<2x256xf32>
    %259 = arith.addf %257, %258 : vector<2x256xf32>
    %cst_105 = arith.constant 2.1858087E-4 : f32
    %cst_106 = arith.constant 0.00573950773 : f32
    %260 = vector.broadcast %cst_105 : f32 to vector<2x256xf32>
    %261 = vector.broadcast %cst_106 : f32 to vector<2x256xf32>
    %262 = arith.select %235, %260, %261 : vector<2x256xi1>, vector<2x256xf32>
    %263 = arith.mulf %259, %241 : vector<2x256xf32>
    %264 = arith.addf %262, %263 : vector<2x256xf32>
    %cst_107 = arith.constant -0.00125372503 : f32
    %cst_108 = arith.constant -0.0076224613 : f32
    %265 = vector.broadcast %cst_107 : f32 to vector<2x256xf32>
    %266 = vector.broadcast %cst_108 : f32 to vector<2x256xf32>
    %267 = arith.select %235, %265, %266 : vector<2x256xi1>, vector<2x256xf32>
    %268 = arith.mulf %264, %241 : vector<2x256xf32>
    %269 = arith.addf %267, %268 : vector<2x256xf32>
    %cst_109 = arith.constant -0.00417768164 : f32
    %cst_110 = arith.constant 0.00943887047 : f32
    %270 = vector.broadcast %cst_109 : f32 to vector<2x256xf32>
    %271 = vector.broadcast %cst_110 : f32 to vector<2x256xf32>
    %272 = arith.select %235, %270, %271 : vector<2x256xi1>, vector<2x256xf32>
    %273 = arith.mulf %269, %241 : vector<2x256xf32>
    %274 = arith.addf %272, %273 : vector<2x256xf32>
    %cst_111 = arith.constant 0.246640727 : f32
    %cst_112 = arith.constant 1.00167406 : f32
    %275 = vector.broadcast %cst_111 : f32 to vector<2x256xf32>
    %276 = vector.broadcast %cst_112 : f32 to vector<2x256xf32>
    %277 = arith.select %235, %275, %276 : vector<2x256xi1>, vector<2x256xf32>
    %278 = arith.mulf %274, %241 : vector<2x256xf32>
    %279 = arith.addf %277, %278 : vector<2x256xf32>
    %cst_113 = arith.constant 1.50140941 : f32
    %cst_114 = arith.constant 2.83297682 : f32
    %280 = vector.broadcast %cst_113 : f32 to vector<2x256xf32>
    %281 = vector.broadcast %cst_114 : f32 to vector<2x256xf32>
    %282 = arith.select %235, %280, %281 : vector<2x256xi1>, vector<2x256xf32>
    %283 = arith.mulf %279, %241 : vector<2x256xf32>
    %284 = arith.addf %282, %283 : vector<2x256xf32>
    %285 = math.absf %227 : vector<2x256xf32>
    %cst_115 = arith.constant 1.000000e+00 : f32
    %286 = vector.broadcast %cst_115 : f32 to vector<2x256xf32>
    %287 = arith.cmpf oeq, %285, %286 : vector<2x256xf32>
    %cst_116 = arith.constant 0x7F800000 : f32
    %288 = vector.broadcast %cst_116 : f32 to vector<2x256xf32>
    %289 = arith.mulf %288, %227 : vector<2x256xf32>
    %290 = arith.mulf %284, %227 : vector<2x256xf32>
    %291 = arith.select %287, %289, %290 : vector<2x256xi1>, vector<2x256xf32>
    %cst_117 = arith.constant 1.41421354 : f32
    %292 = vector.broadcast %cst_117 : f32 to vector<2x256xf32>
    %293 = arith.mulf %292, %291 : vector<2x256xf32>
    %cst_118 = arith.constant 2.000000e+00 : f32
    %294 = vector.broadcast %cst_118 : f32 to vector<2x256xf32>
    %295 = arith.mulf %210, %294 : vector<2x256xf32>
    %cst_119 = arith.constant 1.000000e+00 : f32
    %296 = vector.broadcast %cst_119 : f32 to vector<2x256xf32>
    %297 = arith.subf %295, %296 : vector<2x256xf32>
    %298 = vector.broadcast %3 : vector<2x1xf32> to vector<2x256xf32>
    %299 = arith.mulf %298, %297 : vector<2x256xf32>
    %300 = vector.broadcast %5 : vector<2x1xf32> to vector<2x256xf32>
    %301 = arith.mulf %300, %293 : vector<2x256xf32>
    %302 = arith.addf %299, %301 : vector<2x256xf32>
    %c4 = arith.constant 4 : index
    %c0_120 = arith.constant 0 : index
    %c0_121 = arith.constant 0 : index
    %303 = vector.load %arg2[%c4, %c0_120, %c0_121] : memref<8x34x1xf32, #tpu.memory_space<vmem>>, vector<1x32x1xf32>
    %304 = vector.shape_cast %303 : vector<1x32x1xf32> to vector<32x1xf32>
    %305 = vector.shape_cast %302 : vector<2x256xf32> to vector<2x1x256xf32>
    %306 = vector.shape_cast %304 : vector<32x1xf32> to vector<1x32x1xf32>
    %307 = vector.broadcast %306 : vector<1x32x1xf32> to vector<2x32x256xf32>
    %308 = vector.broadcast %305 : vector<2x1x256xf32> to vector<2x32x256xf32>
    %309 = arith.mulf %307, %308 : vector<2x32x256xf32>
    %310 = arith.addf %208, %309 : vector<2x32x256xf32>
    %311 = vector.broadcast %1 : vector<2x32x1xf32> to vector<2x32x256xf32>
    %312 = arith.addf %310, %311 : vector<2x32x256xf32>
    %313 = arith.mulf %312, %312 : vector<2x32x256xf32>
    %314 = arith.mulf %312, %313 : vector<2x32x256xf32>
    %cst_122 = arith.constant 4.471500e-02 : f32
    %315 = vector.broadcast %cst_122 : f32 to vector<2x32x256xf32>
    %316 = arith.mulf %315, %314 : vector<2x32x256xf32>
    %317 = arith.addf %312, %316 : vector<2x32x256xf32>
    %cst_123 = arith.constant 0.797884583 : f32
    %318 = vector.broadcast %cst_123 : f32 to vector<2x32x256xf32>
    %319 = arith.mulf %318, %317 : vector<2x32x256xf32>
    %320 = math.tanh %319 : vector<2x32x256xf32>
    %cst_124 = arith.constant 1.000000e+00 : f32
    %321 = vector.broadcast %cst_124 : f32 to vector<2x32x256xf32>
    %322 = arith.addf %321, %320 : vector<2x32x256xf32>
    %cst_125 = arith.constant 5.000000e-01 : f32
    %323 = vector.broadcast %cst_125 : f32 to vector<2x32x256xf32>
    %324 = arith.mulf %323, %322 : vector<2x32x256xf32>
    %325 = arith.mulf %312, %324 : vector<2x32x256xf32>
    %c5 = arith.constant 5 : index
    %c0_126 = arith.constant 0 : index
    %c0_127 = arith.constant 0 : index
    %326 = vector.load %arg2[%c5, %c0_126, %c0_127] : memref<8x34x1xf32, #tpu.memory_space<vmem>>, vector<1x32x1xf32>
    %327 = vector.shape_cast %326 : vector<1x32x1xf32> to vector<32x1xf32>
    %328 = vector.shape_cast %327 : vector<32x1xf32> to vector<1x32x1xf32>
    %329 = vector.broadcast %328 : vector<1x32x1xf32> to vector<2x32x256xf32>
    %330 = arith.mulf %329, %325 : vector<2x32x256xf32>
    %cst_128 = arith.constant dense<0.000000e+00> : vector<2x256xf32>
    %331 = vector.multi_reduction <add>, %330, %cst_128 [1] : vector<2x32x256xf32> to vector<2x256xf32>
    %332 = arith.subf %331, %90 : vector<2x256xf32>
    %333 = arith.mulf %332, %332 : vector<2x256xf32>
    %c6 = arith.constant 6 : index
    %c0_129 = arith.constant 0 : index
    %c0_130 = arith.constant 0 : index
    %334 = vector.load %arg2[%c6, %c0_129, %c0_130] : memref<8x34x1xf32, #tpu.memory_space<vmem>>, vector<1x32x1xf32>
    %335 = vector.shape_cast %334 : vector<1x32x1xf32> to vector<32x1xf32>
    %336 = vector.shape_cast %335 : vector<32x1xf32> to vector<1x32x1xf32>
    %337 = vector.broadcast %336 : vector<1x32x1xf32> to vector<2x32x256xf32>
    %338 = arith.mulf %337, %325 : vector<2x32x256xf32>
    %cst_131 = arith.constant dense<0.000000e+00> : vector<2x256xf32>
    %339 = vector.multi_reduction <add>, %338, %cst_131 [1] : vector<2x32x256xf32> to vector<2x256xf32>
    %340 = arith.subf %339, %191 : vector<2x256xf32>
    %341 = arith.mulf %340, %340 : vector<2x256xf32>
    %342 = arith.addf %333, %341 : vector<2x256xf32>
    %c7 = arith.constant 7 : index
    %c0_132 = arith.constant 0 : index
    %c0_133 = arith.constant 0 : index
    %343 = vector.load %arg2[%c7, %c0_132, %c0_133] : memref<8x34x1xf32, #tpu.memory_space<vmem>>, vector<1x32x1xf32>
    %344 = vector.shape_cast %343 : vector<1x32x1xf32> to vector<32x1xf32>
    %345 = vector.shape_cast %344 : vector<32x1xf32> to vector<1x32x1xf32>
    %346 = vector.broadcast %345 : vector<1x32x1xf32> to vector<2x32x256xf32>
    %347 = arith.mulf %346, %325 : vector<2x32x256xf32>
    %cst_134 = arith.constant dense<0.000000e+00> : vector<2x256xf32>
    %348 = vector.multi_reduction <add>, %347, %cst_134 [1] : vector<2x32x256xf32> to vector<2x256xf32>
    %349 = arith.subf %348, %293 : vector<2x256xf32>
    %350 = arith.mulf %349, %349 : vector<2x256xf32>
    %351 = arith.addf %342, %350 : vector<2x256xf32>
    %352 = vector.shape_cast %351 : vector<2x256xf32> to vector<1x2x256xf32>
    %cst_135 = arith.constant dense<0.000000e+00> : vector<1xf32>
    %353 = vector.multi_reduction <add>, %352, %cst_135 [1, 2] : vector<1x2x256xf32> to vector<1xf32>
    %354 = vector.shape_cast %353 : vector<1xf32> to vector<1x1x1xf32>
    %355 = vector.extract %354[0, 0, 0] : f32 from vector<1x1x1xf32>
    %cst_136 = arith.constant 6.51041686E-4 : f32
    %356 = arith.mulf %355, %cst_136 : f32
    %c0_137 = arith.constant 0 : index
    %c0_138 = arith.constant 0 : index
    %357 = memref.load %arg3[%c0_137, %c0_138] : memref<1x1xf32, #tpu.memory_space<smem>>
    memref.store %356, %arg3[%c0_137, %c0_138] : memref<1x1xf32, #tpu.memory_space<smem>>
    return
  }
}

module attributes {stable_mosaic.version = 11 : i64} {
  func.func @_imagen_p_losses_kernel(%arg0: memref<1xi32, #tpu.memory_space<smem>>, %arg1: memref<6x2x256xf32, #tpu.memory_space<vmem>>, %arg2: memref<8x34x1xf32, #tpu.memory_space<vmem>>, %arg3: memref<1x1xf32, #tpu.memory_space<smem>>) attributes {dimension_semantics = [], scalar_prefetch = 0 : i64, scratch_operands = 0 : i64, tpu.core_type = #tpu.core_type<tc>} {
    %c0 = arith.constant 0 : index
    %c0_0 = arith.constant 0 : index
    %c0_1 = arith.constant 0 : index
    %0 = vector.load %arg2[%c0, %c0_0, %c0_1] : memref<8x34x1xf32, #tpu.memory_space<vmem>>, vector<2x32x1xf32>
    %c0_2 = arith.constant 0 : index
    %c32 = arith.constant 32 : index
    %c0_3 = arith.constant 0 : index
    %1 = vector.load %arg2[%c0_2, %c32, %c0_3] : memref<8x34x1xf32, #tpu.memory_space<vmem>>, vector<2x1x1xf32>
    %2 = vector.shape_cast %1 : vector<2x1x1xf32> to vector<2x1xf32>
    %c0_4 = arith.constant 0 : index
    %c33 = arith.constant 33 : index
    %c0_5 = arith.constant 0 : index
    %3 = vector.load %arg2[%c0_4, %c33, %c0_5] : memref<8x34x1xf32, #tpu.memory_space<vmem>>, vector<2x1x1xf32>
    %4 = vector.shape_cast %3 : vector<2x1x1xf32> to vector<2x1xf32>
    %c0_6 = arith.constant 0 : index
    %c0_7 = arith.constant 0 : index
    %c0_8 = arith.constant 0 : index
    %5 = vector.load %arg1[%c0_6, %c0_7, %c0_8] : memref<6x2x256xf32, #tpu.memory_space<vmem>>, vector<1x2x256xf32>
    %6 = vector.shape_cast %5 : vector<1x2x256xf32> to vector<2x256xf32>
    %c3 = arith.constant 3 : index
    %c0_9 = arith.constant 0 : index
    %c0_10 = arith.constant 0 : index
    %7 = vector.load %arg1[%c3, %c0_9, %c0_10] : memref<6x2x256xf32, #tpu.memory_space<vmem>>, vector<1x2x256xf32>
    %8 = vector.shape_cast %7 : vector<1x2x256xf32> to vector<2x256xf32>
    %cst = arith.constant 2.000000e+00 : f32
    %9 = vector.broadcast %cst : f32 to vector<2x256xf32>
    %10 = arith.mulf %6, %9 : vector<2x256xf32>
    %cst_11 = arith.constant 1.000000e+00 : f32
    %11 = vector.broadcast %cst_11 : f32 to vector<2x256xf32>
    %12 = arith.subf %10, %11 : vector<2x256xf32>
    %13 = vector.broadcast %2 : vector<2x1xf32> to vector<2x256xf32>
    %14 = arith.mulf %13, %12 : vector<2x256xf32>
    %15 = vector.broadcast %4 : vector<2x1xf32> to vector<2x256xf32>
    %16 = arith.mulf %15, %8 : vector<2x256xf32>
    %17 = arith.addf %14, %16 : vector<2x256xf32>
    %c2 = arith.constant 2 : index
    %c0_12 = arith.constant 0 : index
    %c0_13 = arith.constant 0 : index
    %18 = vector.load %arg2[%c2, %c0_12, %c0_13] : memref<8x34x1xf32, #tpu.memory_space<vmem>>, vector<1x32x1xf32>
    %19 = vector.shape_cast %18 : vector<1x32x1xf32> to vector<32x1xf32>
    %20 = vector.shape_cast %17 : vector<2x256xf32> to vector<2x1x256xf32>
    %21 = vector.shape_cast %19 : vector<32x1xf32> to vector<1x32x1xf32>
    %22 = vector.broadcast %21 : vector<1x32x1xf32> to vector<2x32x256xf32>
    %23 = vector.broadcast %20 : vector<2x1x256xf32> to vector<2x32x256xf32>
    %24 = arith.mulf %22, %23 : vector<2x32x256xf32>
    %c1 = arith.constant 1 : index
    %c0_14 = arith.constant 0 : index
    %c0_15 = arith.constant 0 : index
    %25 = vector.load %arg1[%c1, %c0_14, %c0_15] : memref<6x2x256xf32, #tpu.memory_space<vmem>>, vector<1x2x256xf32>
    %26 = vector.shape_cast %25 : vector<1x2x256xf32> to vector<2x256xf32>
    %c4 = arith.constant 4 : index
    %c0_16 = arith.constant 0 : index
    %c0_17 = arith.constant 0 : index
    %27 = vector.load %arg1[%c4, %c0_16, %c0_17] : memref<6x2x256xf32, #tpu.memory_space<vmem>>, vector<1x2x256xf32>
    %28 = vector.shape_cast %27 : vector<1x2x256xf32> to vector<2x256xf32>
    %cst_18 = arith.constant 2.000000e+00 : f32
    %29 = vector.broadcast %cst_18 : f32 to vector<2x256xf32>
    %30 = arith.mulf %26, %29 : vector<2x256xf32>
    %cst_19 = arith.constant 1.000000e+00 : f32
    %31 = vector.broadcast %cst_19 : f32 to vector<2x256xf32>
    %32 = arith.subf %30, %31 : vector<2x256xf32>
    %33 = vector.broadcast %2 : vector<2x1xf32> to vector<2x256xf32>
    %34 = arith.mulf %33, %32 : vector<2x256xf32>
    %35 = vector.broadcast %4 : vector<2x1xf32> to vector<2x256xf32>
    %36 = arith.mulf %35, %28 : vector<2x256xf32>
    %37 = arith.addf %34, %36 : vector<2x256xf32>
    %c3_20 = arith.constant 3 : index
    %c0_21 = arith.constant 0 : index
    %c0_22 = arith.constant 0 : index
    %38 = vector.load %arg2[%c3_20, %c0_21, %c0_22] : memref<8x34x1xf32, #tpu.memory_space<vmem>>, vector<1x32x1xf32>
    %39 = vector.shape_cast %38 : vector<1x32x1xf32> to vector<32x1xf32>
    %40 = vector.shape_cast %37 : vector<2x256xf32> to vector<2x1x256xf32>
    %41 = vector.shape_cast %39 : vector<32x1xf32> to vector<1x32x1xf32>
    %42 = vector.broadcast %41 : vector<1x32x1xf32> to vector<2x32x256xf32>
    %43 = vector.broadcast %40 : vector<2x1x256xf32> to vector<2x32x256xf32>
    %44 = arith.mulf %42, %43 : vector<2x32x256xf32>
    %45 = arith.addf %24, %44 : vector<2x32x256xf32>
    %c2_23 = arith.constant 2 : index
    %c0_24 = arith.constant 0 : index
    %c0_25 = arith.constant 0 : index
    %46 = vector.load %arg1[%c2_23, %c0_24, %c0_25] : memref<6x2x256xf32, #tpu.memory_space<vmem>>, vector<1x2x256xf32>
    %47 = vector.shape_cast %46 : vector<1x2x256xf32> to vector<2x256xf32>
    %c5 = arith.constant 5 : index
    %c0_26 = arith.constant 0 : index
    %c0_27 = arith.constant 0 : index
    %48 = vector.load %arg1[%c5, %c0_26, %c0_27] : memref<6x2x256xf32, #tpu.memory_space<vmem>>, vector<1x2x256xf32>
    %49 = vector.shape_cast %48 : vector<1x2x256xf32> to vector<2x256xf32>
    %cst_28 = arith.constant 2.000000e+00 : f32
    %50 = vector.broadcast %cst_28 : f32 to vector<2x256xf32>
    %51 = arith.mulf %47, %50 : vector<2x256xf32>
    %cst_29 = arith.constant 1.000000e+00 : f32
    %52 = vector.broadcast %cst_29 : f32 to vector<2x256xf32>
    %53 = arith.subf %51, %52 : vector<2x256xf32>
    %54 = vector.broadcast %2 : vector<2x1xf32> to vector<2x256xf32>
    %55 = arith.mulf %54, %53 : vector<2x256xf32>
    %56 = vector.broadcast %4 : vector<2x1xf32> to vector<2x256xf32>
    %57 = arith.mulf %56, %49 : vector<2x256xf32>
    %58 = arith.addf %55, %57 : vector<2x256xf32>
    %c4_30 = arith.constant 4 : index
    %c0_31 = arith.constant 0 : index
    %c0_32 = arith.constant 0 : index
    %59 = vector.load %arg2[%c4_30, %c0_31, %c0_32] : memref<8x34x1xf32, #tpu.memory_space<vmem>>, vector<1x32x1xf32>
    %60 = vector.shape_cast %59 : vector<1x32x1xf32> to vector<32x1xf32>
    %61 = vector.shape_cast %58 : vector<2x256xf32> to vector<2x1x256xf32>
    %62 = vector.shape_cast %60 : vector<32x1xf32> to vector<1x32x1xf32>
    %63 = vector.broadcast %62 : vector<1x32x1xf32> to vector<2x32x256xf32>
    %64 = vector.broadcast %61 : vector<2x1x256xf32> to vector<2x32x256xf32>
    %65 = arith.mulf %63, %64 : vector<2x32x256xf32>
    %66 = arith.addf %45, %65 : vector<2x32x256xf32>
    %67 = vector.broadcast %0 : vector<2x32x1xf32> to vector<2x32x256xf32>
    %68 = arith.addf %66, %67 : vector<2x32x256xf32>
    %69 = arith.mulf %68, %68 : vector<2x32x256xf32>
    %70 = arith.mulf %68, %69 : vector<2x32x256xf32>
    %cst_33 = arith.constant 4.471500e-02 : f32
    %71 = vector.broadcast %cst_33 : f32 to vector<2x32x256xf32>
    %72 = arith.mulf %71, %70 : vector<2x32x256xf32>
    %73 = arith.addf %68, %72 : vector<2x32x256xf32>
    %cst_34 = arith.constant 0.797884583 : f32
    %74 = vector.broadcast %cst_34 : f32 to vector<2x32x256xf32>
    %75 = arith.mulf %74, %73 : vector<2x32x256xf32>
    %76 = math.tanh %75 : vector<2x32x256xf32>
    %cst_35 = arith.constant 1.000000e+00 : f32
    %77 = vector.broadcast %cst_35 : f32 to vector<2x32x256xf32>
    %78 = arith.addf %77, %76 : vector<2x32x256xf32>
    %cst_36 = arith.constant 5.000000e-01 : f32
    %79 = vector.broadcast %cst_36 : f32 to vector<2x32x256xf32>
    %80 = arith.mulf %79, %78 : vector<2x32x256xf32>
    %81 = arith.mulf %68, %80 : vector<2x32x256xf32>
    %c5_37 = arith.constant 5 : index
    %c0_38 = arith.constant 0 : index
    %c0_39 = arith.constant 0 : index
    %82 = vector.load %arg2[%c5_37, %c0_38, %c0_39] : memref<8x34x1xf32, #tpu.memory_space<vmem>>, vector<1x32x1xf32>
    %83 = vector.shape_cast %82 : vector<1x32x1xf32> to vector<32x1xf32>
    %84 = vector.shape_cast %83 : vector<32x1xf32> to vector<1x32x1xf32>
    %85 = vector.broadcast %84 : vector<1x32x1xf32> to vector<2x32x256xf32>
    %86 = arith.mulf %85, %81 : vector<2x32x256xf32>
    %cst_40 = arith.constant dense<0.000000e+00> : vector<2x256xf32>
    %87 = vector.multi_reduction <add>, %86, %cst_40 [1] : vector<2x32x256xf32> to vector<2x256xf32>
    %88 = arith.subf %87, %8 : vector<2x256xf32>
    %89 = arith.mulf %88, %88 : vector<2x256xf32>
    %c6 = arith.constant 6 : index
    %c0_41 = arith.constant 0 : index
    %c0_42 = arith.constant 0 : index
    %90 = vector.load %arg2[%c6, %c0_41, %c0_42] : memref<8x34x1xf32, #tpu.memory_space<vmem>>, vector<1x32x1xf32>
    %91 = vector.shape_cast %90 : vector<1x32x1xf32> to vector<32x1xf32>
    %92 = vector.shape_cast %91 : vector<32x1xf32> to vector<1x32x1xf32>
    %93 = vector.broadcast %92 : vector<1x32x1xf32> to vector<2x32x256xf32>
    %94 = arith.mulf %93, %81 : vector<2x32x256xf32>
    %cst_43 = arith.constant dense<0.000000e+00> : vector<2x256xf32>
    %95 = vector.multi_reduction <add>, %94, %cst_43 [1] : vector<2x32x256xf32> to vector<2x256xf32>
    %96 = arith.subf %95, %28 : vector<2x256xf32>
    %97 = arith.mulf %96, %96 : vector<2x256xf32>
    %98 = arith.addf %89, %97 : vector<2x256xf32>
    %c7 = arith.constant 7 : index
    %c0_44 = arith.constant 0 : index
    %c0_45 = arith.constant 0 : index
    %99 = vector.load %arg2[%c7, %c0_44, %c0_45] : memref<8x34x1xf32, #tpu.memory_space<vmem>>, vector<1x32x1xf32>
    %100 = vector.shape_cast %99 : vector<1x32x1xf32> to vector<32x1xf32>
    %101 = vector.shape_cast %100 : vector<32x1xf32> to vector<1x32x1xf32>
    %102 = vector.broadcast %101 : vector<1x32x1xf32> to vector<2x32x256xf32>
    %103 = arith.mulf %102, %81 : vector<2x32x256xf32>
    %cst_46 = arith.constant dense<0.000000e+00> : vector<2x256xf32>
    %104 = vector.multi_reduction <add>, %103, %cst_46 [1] : vector<2x32x256xf32> to vector<2x256xf32>
    %105 = arith.subf %104, %49 : vector<2x256xf32>
    %106 = arith.mulf %105, %105 : vector<2x256xf32>
    %107 = arith.addf %98, %106 : vector<2x256xf32>
    %108 = vector.shape_cast %107 : vector<2x256xf32> to vector<1x2x256xf32>
    %cst_47 = arith.constant dense<0.000000e+00> : vector<1xf32>
    %109 = vector.multi_reduction <add>, %108, %cst_47 [1, 2] : vector<1x2x256xf32> to vector<1xf32>
    %110 = vector.shape_cast %109 : vector<1xf32> to vector<1x1x1xf32>
    %111 = vector.extract %110[0, 0, 0] : f32 from vector<1x1x1xf32>
    %cst_48 = arith.constant 6.51041686E-4 : f32
    %112 = arith.mulf %111, %cst_48 : f32
    %c0_49 = arith.constant 0 : index
    %c0_50 = arith.constant 0 : index
    %113 = memref.load %arg3[%c0_49, %c0_50] : memref<1x1xf32, #tpu.memory_space<smem>>
    memref.store %112, %arg3[%c0_49, %c0_50] : memref<1x1xf32, #tpu.memory_space<smem>>
    return
  }
}

</mosaic_0001>

<llo_original>
// kernel: imagen_forward.3
$region0: #{imagen_forward.3}
  #allocation0 [shape = 'u32[]', space=smem, size = 0x4, offset = 0x4, fixed_abs, tag = 'smem constant byte address 0x4 - core index']
  #allocation1 [shape = 'u32[72,128]{1,0:T(1,128)}', space=vmem, size = 0x9000, scoped, tag = 'internal scratch']
  #allocation2 [shape = 's32[1]{0:T(128)S(6)}', space=smem, size = 0x200, scoped, tag = 'scoped memory for imagen_forward.3']
  %s0 = inlined_call_operand.<no memory space> [shape: s32[1], index: 0, kind: input, shape index: {}]
  %s1 = inlined_call_operand.vmem [shape: f32[3,2,256], index: 1, kind: input, shape index: {}]
  %s2 = inlined_call_operand.vmem [shape: f32[8,34,1], index: 2, kind: input, shape index: {}]
  %s3 = inlined_call_operand.hbm [shape: f32[1,1], index: 3, kind: output, shape index: {}]
  %s4 = sld [smem:[#allocation0]]
  $region22: #{imagen_forward.3} parent=0
    _
  %s6 = ssub.s32 1, %s4
  %s7 = scalar_select 0, %s6, %s4
  %8 = sst [smem:[#allocation2]] %s0
  $region1: #{imagen_forward.3} parent=0
    #allocation3 [shape = 'u8[512]{0}', space=smem, size = 0x200, scoped, tag = 'output window, operand 0, single buffered']
    #allocation4 [shape = 's32[1]{0}', space=sflag, size = 0x4, scoped, tag = 'scoped memory for imagen_forward.3']
    %9 = vsyncpa [#allocation4], 0
    // Predicated region
    $region2: #{imagen_forward.3} parent=1 // pred_check
      _
    $region3: #{imagen_forward.3} parent=1 // pred_check_branch
      %11 = sbr.rel (0) target = $region5
    $region4: #{imagen_forward.3} parent=1 // pred_region
      _
    $region5: #{imagen_forward.3} parent=1 // pred_fallthru
      _
    // Predicated region
    $region6: #{imagen_forward.3} parent=1 // pred_check
      _
    $region7: #{imagen_forward.3} parent=1 // pred_check_branch
      %13 = sbr.rel (0) target = $region9
    $region8: #{imagen_forward.3} parent=1 // pred_region
      _
    $region9: #{imagen_forward.3} parent=1 // pred_fallthru
      _
    // Predicated region
    $region10: #{imagen_forward.3} parent=1 // pred_check
      _
    $region11: #{imagen_forward.3} parent=1 // pred_check_branch
      %15 = sbr.rel (0) target = $region13
    $region12: #{imagen_forward.3} parent=1 // pred_region
      _
    $region13: #{imagen_forward.3} parent=1 // pred_fallthru
      _
    %s16 = sld [smem:[#allocation2]]
    %v17 = vlaneseq
    %v18 = vstv %s16
    %v19 = vxor.u32 %v18, %v18
    %v20 = vxor.u32 %v19, 466688986
    %v21 = vadd.s32 %v17, %v18
    %v22 = vadd.s32 %v21, %v21
    %v23 = vshll.u32 %v21, 13
    %v24 = vshrl.u32 %v21, 19
    %v25 = vor.u32 %v23, %v24
    %v26 = vxor.u32 %v22, %v25
    %v27 = vadd.s32 %v22, %v26
    %v28 = vshll.u32 %v26, 15
    %v29 = vshrl.u32 %v26, 17
    %v30 = vor.u32 %v28, %v29
    %v31 = vxor.u32 %v27, %v30
    %v32 = vadd.s32 %v27, %v31
    %v33 = vshll.u32 %v31, 26
    %v34 = vshrl.u32 %v31, 6
    %v35 = vor.u32 %v33, %v34
    %v36 = vxor.u32 %v32, %v35
    %v37 = vadd.s32 %v32, %v36
    %v38 = vshll.u32 %v36, 6
    %v39 = vshrl.u32 %v36, 26
    %v40 = vor.u32 %v38, %v39
    %v41 = vxor.u32 %v37, %v40
    %v42 = vadd.s32 %v37, %v18
    %v43 = vadd.s32 %v41, %v20
    %v44 = vadd.s32 %v43, 1
    %v45 = vadd.s32 %v42, %v44
    %v46 = vshll.u32 %v44, 17
    %v47 = vshrl.u32 %v44, 15
    %v48 = vor.u32 %v46, %v47
    %v49 = vxor.u32 %v45, %v48
    %v50 = vadd.s32 %v45, %v49
    %v51 = vshll.u32 %v49, 29
    %v52 = vshrl.u32 %v49, 3
    %v53 = vor.u32 %v51, %v52
    %v54 = vxor.u32 %v50, %v53
    %v55 = vadd.s32 %v50, %v54
    %v56 = vshll.u32 %v54, 16
    %v57 = vshrl.u32 %v54, 16
    %v58 = vor.u32 %v56, %v57
    %v59 = vxor.u32 %v55, %v58
    %v60 = vadd.s32 %v55, %v59
    %v61 = vshll.u32 %v59, 24
    %v62 = vshrl.u32 %v59, 8
    %v63 = vor.u32 %v61, %v62
    %v64 = vxor.u32 %v60, %v63
    %v65 = vadd.s32 %v60, %v20
    %v66 = vadd.s32 %v64, %v18
    %v67 = vadd.s32 %v66, 2
    %v68 = vadd.s32 %v65, %v67
    %v69 = vshll.u32 %v67, 13
    %v70 = vshrl.u32 %v67, 19
    %v71 = vor.u32 %v69, %v70
    %v72 = vxor.u32 %v68, %v71
    %v73 = vadd.s32 %v68, %v72
    %v74 = vshll.u32 %v72, 15
    %v75 = vshrl.u32 %v72, 17
    %v76 = vor.u32 %v74, %v75
    %v77 = vxor.u32 %v73, %v76
    %v78 = vadd.s32 %v73, %v77
    %v79 = vshll.u32 %v77, 26
    %v80 = vshrl.u32 %v77, 6
    %v81 = vor.u32 %v79, %v80
    %v82 = vxor.u32 %v78, %v81
    %v83 = vadd.s32 %v78, %v82
    %v84 = vshll.u32 %v82, 6
    %v85 = vshrl.u32 %v82, 26
    %v86 = vor.u32 %v84, %v85
    %v87 = vxor.u32 %v83, %v86
    %v88 = vadd.s32 %v83, %v18
    %v89 = vadd.s32 %v87, %v18
    %v90 = vadd.s32 %v89, 3
    %v91 = vadd.s32 %v88, %v90
    %v92 = vshll.u32 %v90, 17
    %v93 = vshrl.u32 %v90, 15
    %v94 = vor.u32 %v92, %v93
    %v95 = vxor.u32 %v91, %v94
    %v96 = vadd.s32 %v91, %v95
    %v97 = vshll.u32 %v95, 29
    %v98 = vshrl.u32 %v95, 3
    %v99 = vor.u32 %v97, %v98
    %v100 = vxor.u32 %v96, %v99
    %v101 = vadd.s32 %v96, %v100
    %v102 = vshll.u32 %v100, 16
    %v103 = vshrl.u32 %v100, 16
    %v104 = vor.u32 %v102, %v103
    %v105 = vxor.u32 %v101, %v104
    %v106 = vadd.s32 %v101, %v105
    %v107 = vshll.u32 %v105, 24
    %v108 = vshrl.u32 %v105, 8
    %v109 = vor.u32 %v107, %v108
    %v110 = vxor.u32 %v106, %v109
    %v111 = vadd.s32 %v106, %v18
    %v112 = vadd.s32 %v110, %v20
    %v113 = vadd.s32 %v112, 4
    %v114 = vadd.s32 %v111, %v113
    %v115 = vshll.u32 %v113, 13
    %v116 = vshrl.u32 %v113, 19
    %v117 = vor.u32 %v115, %v116
    %v118 = vxor.u32 %v114, %v117
    %v119 = vadd.s32 %v114, %v118
    %v120 = vshll.u32 %v118, 15
    %v121 = vshrl.u32 %v118, 17
    %v122 = vor.u32 %v120, %v121
    %v123 = vxor.u32 %v119, %v122
    %v124 = vadd.s32 %v119, %v123
    %v125 = vshll.u32 %v123, 26
    %v126 = vshrl.u32 %v123, 6
    %v127 = vor.u32 %v125, %v126
    %v128 = vxor.u32 %v124, %v127
    %v129 = vadd.s32 %v124, %v128
    %v130 = vshll.u32 %v128, 6
    %v131 = vshrl.u32 %v128, 26
    %v132 = vor.u32 %v130, %v131
    %v133 = vxor.u32 %v129, %v132
    %v134 = vadd.s32 %v129, %v20
    %v135 = vadd.s32 %v133, %v18
    %v136 = vadd.s32 %v135, 5
    %v137 = vxor.u32 %v134, %v136
    %138 = set.rngseed %v137
    %v139 = vld [vmem:[%s2] sm:$0xff]
    %v140 = vld [vmem:[%s2 + $0x8] sm:$0xff]
    %v141 = vld [vmem:[%s2 + $0x10] sm:$0xff]
    %v142 = vld [vmem:[%s2 + $0x18] sm:$0xff]
    %v143 = vld [vmem:[%s2 + $0x28] sm:$0xff]
    %v144 = vld [vmem:[%s2 + $0x30] sm:$0xff]
    %v145 = vld [vmem:[%s2 + $0x38] sm:$0xff]
    %v146 = vld [vmem:[%s2 + $0x40] sm:$0xff]
    %v147 = vld [vmem:[%s2 + $0x20] sm:$0x1]
    %v148 = vld [vmem:[%s2 + $0x48] sm:$0x1]
    %v149 = vld [vmem:[%s2 + $0x21] sm:$0x1]
    %v150 = vld [vmem:[%s2 + $0x49] sm:$0x1]
    %v151 = vld [vmem:[%s1] sm:$0xf]
    %v152 = vrng
    %v153 = vrng
    %v154 = vshrl.u32 %v152, 9
    %v155 = vshrl.u32 %v153, 9
    %v156 = vor.u32 %v154, 1065353216
    %v157 = vor.u32 %v155, 1065353216
    %v160 = vsub.f32 %v156, 1.0
    %v161 = vsub.f32 %v157, 1.0
    %v162 = vmul.f32 %v160, 2.0
    %v163 = vmul.f32 %v161, 2.0
    %v164 = vadd.f32 %v162, -0.99999994
    %v165 = vadd.f32 %v163, -0.99999994
    %v166 = vmax.f32 %v164, -0.99999994
    %v167 = vmax.f32 %v165, -0.99999994
    %v168 = vsub.f32 0.0, %v166
    %v169 = vsub.f32 0.0, %v167
    %v170 = vmul.f32 %v166, %v168
    %v171 = vmul.f32 %v167, %v169
    %v172 = vadd.f32 %v170, 1.0
    %v173 = vlog2.pop %v172
    %v174 = vmul.f32 %v173, 0.6931472
    %v175 = vmul.f32 -0.5, %v170
    %v176 = vadd.f32 %v175, 1.0
    %v177 = vmul.f32 %v176, %v170
    %v178 = vand.u32 2147483647, %v170
    %vm179 = vcmp.lt.f32.partialorder %v178, 0.0004427343
    %v180 = vsel %vm179, %v177, %v174
    %v181 = vadd.f32 %v171, 1.0
    %v182 = vlog2.pop %v181
    %v183 = vmul.f32 %v182, 0.6931472
    %v184 = vmul.f32 -0.5, %v171
    %v185 = vadd.f32 %v184, 1.0
    %v186 = vmul.f32 %v185, %v171
    %v187 = vand.u32 2147483647, %v171
    %vm188 = vcmp.lt.f32.partialorder %v187, 0.0004427343
    %v189 = vsel %vm188, %v186, %v183
    %v190 = vsub.f32 0.0, %v180
    %v191 = vsub.f32 0.0, %v189
    %vm192 = vcmp.lt.f32.partialorder %v190, 5.0
    %vm193 = vcmp.lt.f32.partialorder %v191, 5.0
    %v194 = vsub.f32 %v190, 2.5
    %v195 = vsub.f32 %v191, 2.5
    %v196 = vrsqrt.pop %v190
    %v197 = vmul.f32 %v196, %v190
    %v198 = vmul.f32 %v197, %v196
    %v199 = vmul.f32 0.5, %v198
    %v200 = vsub.f32 1.5, %v199
    %v201 = vmul.f32 %v196, %v200
    %v202 = vmul.f32 %v190, %v201
    %vm203 = vcmp.eq.f32.partialorder %v190, inf
    %v204 = vsel %vm203, %v190, %v202
    %vm205 = vcmp.eq.f32.partialorder %v190, 0.0
    %v206 = vand.u32 %v190, 2147483648
    %v207 = vsel %vm205, %v206, %v204
    %v208 = vrsqrt.pop %v191
    %v209 = vmul.f32 %v208, %v191
    %v210 = vmul.f32 %v209, %v208
    %v211 = vmul.f32 0.5, %v210
    %v212 = vsub.f32 1.5, %v211
    %v213 = vmul.f32 %v208, %v212
    %v214 = vmul.f32 %v191, %v213
    %vm215 = vcmp.eq.f32.partialorder %v191, inf
    %v216 = vsel %vm215, %v191, %v214
    %vm217 = vcmp.eq.f32.partialorder %v191, 0.0
    %v218 = vand.u32 %v191, 2147483648
    %v219 = vsel %vm217, %v218, %v216
    %v220 = vsub.f32 %v207, 3.0
    %v221 = vsub.f32 %v219, 3.0
    %v222 = vsel %vm192, %v194, %v220
    %v223 = vsel %vm193, %v195, %v221
    %v224 = vsel %vm192, 2.8102264e-08, -0.00020021426
    %v225 = vsel %vm193, 2.8102264e-08, -0.00020021426
    %v226 = vsel %vm192, 3.4327394e-07, 0.00010095056
    %v227 = vsel %vm193, 3.4327394e-07, 0.00010095056
    %v228 = vmul.f32 %v224, %v222
    %v229 = vmul.f32 %v225, %v223
    %v230 = vadd.f32 %v226, %v228
    %v231 = vadd.f32 %v227, %v229
    %v232 = vsel %vm192, -3.5233877e-06, 0.0013493432
    %v233 = vsel %vm193, -3.5233877e-06, 0.0013493432
    %v234 = vmul.f32 %v230, %v222
    %v235 = vmul.f32 %v231, %v223
    %v236 = vadd.f32 %v232, %v234
    %v237 = vadd.f32 %v233, %v235
    %v238 = vsel %vm192, -4.3915065e-06, -0.0036734284
    %v239 = vsel %vm193, -4.3915065e-06, -0.0036734284
    %v240 = vmul.f32 %v236, %v222
    %v241 = vmul.f32 %v237, %v223
    %v242 = vadd.f32 %v238, %v240
    %v243 = vadd.f32 %v239, %v241
    %v244 = vsel %vm192, 0.00021858087, 0.0057395077
    %v245 = vsel %vm193, 0.00021858087, 0.0057395077
    %v246 = vmul.f32 %v242, %v222
    %v247 = vmul.f32 %v243, %v223
    %v248 = vadd.f32 %v244, %v246
    %v249 = vadd.f32 %v245, %v247
    %v250 = vsel %vm192, -0.001253725, -0.0076224613
    %v251 = vsel %vm193, -0.001253725, -0.0076224613
    %v252 = vmul.f32 %v248, %v222
    %v253 = vmul.f32 %v249, %v223
    %v254 = vadd.f32 %v250, %v252
    %v255 = vadd.f32 %v251, %v253
    %v256 = vsel %vm192, -0.0041776816, 0.0094388705
    %v257 = vsel %vm193, -0.0041776816, 0.0094388705
    %v258 = vmul.f32 %v254, %v222
    %v259 = vmul.f32 %v255, %v223
    %v260 = vadd.f32 %v256, %v258
    %v261 = vadd.f32 %v257, %v259
    %v262 = vsel %vm192, 0.24664073, 1.001674
    %v263 = vsel %vm193, 0.24664073, 1.001674
    %v264 = vmul.f32 %v260, %v222
    %v265 = vmul.f32 %v261, %v223
    %v266 = vadd.f32 %v262, %v264
    %v267 = vadd.f32 %v263, %v265
    %v268 = vsel %vm192, 1.5014094, 2.8329768
    %v269 = vsel %vm193, 1.5014094, 2.8329768
    %v270 = vmul.f32 %v266, %v222
    %v271 = vmul.f32 %v267, %v223
    %v272 = vadd.f32 %v268, %v270
    %v273 = vadd.f32 %v269, %v271
    %v274 = vand.u32 2147483647, %v166
    %v275 = vand.u32 2147483647, %v167
    %vm276 = vcmp.eq.f32.partialorder %v274, 1.0
    %vm277 = vcmp.eq.f32.partialorder %v275, 1.0
    %v278 = vmul.f32 %v166, inf
    %v279 = vmul.f32 %v167, inf
    %v280 = vmul.f32 %v272, %v166
    %v281 = vmul.f32 %v273, %v167
    %v282 = vsel %vm276, %v278, %v280
    %v283 = vsel %vm277, %v279, %v281
    %v284 = vmul.f32 %v282, 1.4142135
    %v285 = vmul.f32 %v283, 1.4142135
    %v286 = vmul.f32 %v151, 2.0
    %v287 = vsub.f32 %v286, 1.0
    %289 = vset.pattern.permute.xlu0 0
    %290 = vperm.xlu0 %289, %v147
    %v291 = vpop.permute.xlu0 %290
    %294 = vset.pattern.permute.xlu0 0
    %295 = vperm.xlu0 %294, %v148
    %v296 = vpop.permute.xlu0 %295
    %299 = vst [vmem:[#allocation1] ss:$4 sm:$0xff] %v287
    %v300 = vld.sshfl [vmem:[#allocation1] sm:$0xff pattern:$0x73625140]
    %v301 = vld.sshfl [vmem:[#allocation1 + $0x8] sm:$0xff pattern:$0x73625140]
    %v302 = vrot.slane %v300, 1
    %v303 = vrot.slane %v301, 1
    %v308 = vmul.f32 %v291, %v300
    %v309 = vmul.f32 %v291, %v301
    %v310 = vmul.f32 %v296, %v302
    %v311 = vmul.f32 %v296, %v303
    %313 = vset.pattern.permute.xlu0 0
    %314 = vperm.xlu0 %313, %v149
    %v315 = vpop.permute.xlu0 %314
    %318 = vset.pattern.permute.xlu0 0
    %319 = vperm.xlu0 %318, %v150
    %v320 = vpop.permute.xlu0 %319
    %v324 = vrot.slane %v284, 1
    %v325 = vrot.slane %v285, 1
    %v330 = vmul.f32 %v315, %v284
    %v331 = vmul.f32 %v315, %v285
    %v332 = vmul.f32 %v320, %v324
    %v333 = vmul.f32 %v320, %v325
    %v334 = vadd.f32 %v308, %v330
    %v335 = vadd.f32 %v309, %v331
    %v336 = vadd.f32 %v310, %v332
    %v337 = vadd.f32 %v311, %v333
    %s338 = scalar_lea.vmem %s2, 80
    %v339 = vld [vmem:[%s338] sm:$0xff]
    %v340 = vld [vmem:[%s338 + $0x8] sm:$0xff]
    %v341 = vld [vmem:[%s338 + $0x10] sm:$0xff]
    %v342 = vld [vmem:[%s338 + $0x18] sm:$0xff]
    %344 = vset.pattern.permute.xlu0 0
    %345 = vperm.xlu0 %344, %v339
    %v346 = vpop.permute.xlu0 %345
    %349 = vset.pattern.permute.xlu0 0
    %350 = vperm.xlu0 %349, %v340
    %v351 = vpop.permute.xlu0 %350
    %354 = vset.pattern.permute.xlu0 0
    %355 = vperm.xlu0 %354, %v341
    %v356 = vpop.permute.xlu0 %355
    %359 = vset.pattern.permute.xlu0 0
    %360 = vperm.xlu0 %359, %v342
    %v361 = vpop.permute.xlu0 %360
    %v363 = vperm.slane %v334, 0
    %v364 = vperm.slane %v335, 0
    %v365 = vperm.slane %v336, 0
    %v366 = vperm.slane %v337, 0
    %v367 = vmul.f32 %v346, %v363
    %v368 = vmul.f32 %v346, %v364
    %v369 = vmul.f32 %v351, %v363
    %v370 = vmul.f32 %v351, %v364
    %v371 = vmul.f32 %v356, %v363
    %v372 = vmul.f32 %v356, %v364
    %v373 = vmul.f32 %v361, %v363
    %v374 = vmul.f32 %v361, %v364
    %v375 = vmul.f32 %v346, %v365
    %v376 = vmul.f32 %v346, %v366
    %v377 = vmul.f32 %v351, %v365
    %v378 = vmul.f32 %v351, %v366
    %v379 = vmul.f32 %v356, %v365
    %v380 = vmul.f32 %v356, %v366
    %v381 = vmul.f32 %v361, %v365
    %v382 = vmul.f32 %v361, %v366
    %s383 = scalar_lea.vmem %s1, 4
    %v384 = vld [vmem:[%s383] sm:$0xf]
    %v385 = vrng
    %v386 = vrng
    %v387 = vshrl.u32 %v385, 9
    %v388 = vshrl.u32 %v386, 9
    %v389 = vor.u32 %v387, 1065353216
    %v390 = vor.u32 %v388, 1065353216
    %v393 = vsub.f32 %v389, 1.0
    %v394 = vsub.f32 %v390, 1.0
    %v395 = vmul.f32 %v393, 2.0
    %v396 = vmul.f32 %v394, 2.0
    %v397 = vadd.f32 %v395, -0.99999994
    %v398 = vadd.f32 %v396, -0.99999994
    %v399 = vmax.f32 %v397, -0.99999994
    %v400 = vmax.f32 %v398, -0.99999994
    %v401 = vsub.f32 0.0, %v399
    %v402 = vsub.f32 0.0, %v400
    %v403 = vmul.f32 %v399, %v401
    %v404 = vmul.f32 %v400, %v402
    %v405 = vadd.f32 %v403, 1.0
    %v406 = vlog2.pop %v405
    %v407 = vmul.f32 %v406, 0.6931472
    %v408 = vmul.f32 -0.5, %v403
    %v409 = vadd.f32 %v408, 1.0
    %v410 = vmul.f32 %v409, %v403
    %v411 = vand.u32 2147483647, %v403
    %vm412 = vcmp.lt.f32.partialorder %v411, 0.0004427343
    %v413 = vsel %vm412, %v410, %v407
    %v414 = vadd.f32 %v404, 1.0
    %v415 = vlog2.pop %v414
    %v416 = vmul.f32 %v415, 0.6931472
    %v417 = vmul.f32 -0.5, %v404
    %v418 = vadd.f32 %v417, 1.0
    %v419 = vmul.f32 %v418, %v404
    %v420 = vand.u32 2147483647, %v404
    %vm421 = vcmp.lt.f32.partialorder %v420, 0.0004427343
    %v422 = vsel %vm421, %v419, %v416
    %v423 = vsub.f32 0.0, %v413
    %v424 = vsub.f32 0.0, %v422
    %vm425 = vcmp.lt.f32.partialorder %v423, 5.0
    %vm426 = vcmp.lt.f32.partialorder %v424, 5.0
    %v427 = vsub.f32 %v423, 2.5
    %v428 = vsub.f32 %v424, 2.5
    %v429 = vrsqrt.pop %v423
    %v430 = vmul.f32 %v429, %v423
    %v431 = vmul.f32 %v430, %v429
    %v432 = vmul.f32 0.5, %v431
    %v433 = vsub.f32 1.5, %v432
    %v434 = vmul.f32 %v429, %v433
    %v435 = vmul.f32 %v423, %v434
    %vm436 = vcmp.eq.f32.partialorder %v423, inf
    %v437 = vsel %vm436, %v423, %v435
    %vm438 = vcmp.eq.f32.partialorder %v423, 0.0
    %v439 = vand.u32 %v423, 2147483648
    %v440 = vsel %vm438, %v439, %v437
    %v441 = vrsqrt.pop %v424
    %v442 = vmul.f32 %v441, %v424
    %v443 = vmul.f32 %v442, %v441
    %v444 = vmul.f32 0.5, %v443
    %v445 = vsub.f32 1.5, %v444
    %v446 = vmul.f32 %v441, %v445
    %v447 = vmul.f32 %v424, %v446
    %vm448 = vcmp.eq.f32.partialorder %v424, inf
    %v449 = vsel %vm448, %v424, %v447
    %vm450 = vcmp.eq.f32.partialorder %v424, 0.0
    %v451 = vand.u32 %v424, 2147483648
    %v452 = vsel %vm450, %v451, %v449
    %v453 = vsub.f32 %v440, 3.0
    %v454 = vsub.f32 %v452, 3.0
    %v455 = vsel %vm425, %v427, %v453
    %v456 = vsel %vm426, %v428, %v454
    %v457 = vsel %vm425, 2.8102264e-08, -0.00020021426
    %v458 = vsel %vm426, 2.8102264e-08, -0.00020021426
    %v459 = vsel %vm425, 3.4327394e-07, 0.00010095056
    %v460 = vsel %vm426, 3.4327394e-07, 0.00010095056
    %v461 = vmul.f32 %v457, %v455
    %v462 = vmul.f32 %v458, %v456
    %v463 = vadd.f32 %v459, %v461
    %v464 = vadd.f32 %v460, %v462
    %v465 = vsel %vm425, -3.5233877e-06, 0.0013493432
    %v466 = vsel %vm426, -3.5233877e-06, 0.0013493432
    %v467 = vmul.f32 %v463, %v455
    %v468 = vmul.f32 %v464, %v456
    %v469 = vadd.f32 %v465, %v467
    %v470 = vadd.f32 %v466, %v468
    %v471 = vsel %vm425, -4.3915065e-06, -0.0036734284
    %v472 = vsel %vm426, -4.3915065e-06, -0.0036734284
    %v473 = vmul.f32 %v469, %v455
    %v474 = vmul.f32 %v470, %v456
    %v475 = vadd.f32 %v471, %v473
    %v476 = vadd.f32 %v472, %v474
    %v477 = vsel %vm425, 0.00021858087, 0.0057395077
    %v478 = vsel %vm426, 0.00021858087, 0.0057395077
    %v479 = vmul.f32 %v475, %v455
    %v480 = vmul.f32 %v476, %v456
    %v481 = vadd.f32 %v477, %v479
    %v482 = vadd.f32 %v478, %v480
    %v483 = vsel %vm425, -0.001253725, -0.0076224613
    %v484 = vsel %vm426, -0.001253725, -0.0076224613
    %v485 = vmul.f32 %v481, %v455
    %v486 = vmul.f32 %v482, %v456
    %v487 = vadd.f32 %v483, %v485
    %v488 = vadd.f32 %v484, %v486
    %v489 = vsel %vm425, -0.0041776816, 0.0094388705
    %v490 = vsel %vm426, -0.0041776816, 0.0094388705
    %v491 = vmul.f32 %v487, %v455
    %v492 = vmul.f32 %v488, %v456
    %v493 = vadd.f32 %v489, %v491
    %v494 = vadd.f32 %v490, %v492
    %v495 = vsel %vm425, 0.24664073, 1.001674
    %v496 = vsel %vm426, 0.24664073, 1.001674
    %v497 = vmul.f32 %v493, %v455
    %v498 = vmul.f32 %v494, %v456
    %v499 = vadd.f32 %v495, %v497
    %v500 = vadd.f32 %v496, %v498
    %v501 = vsel %vm425, 1.5014094, 2.8329768
    %v502 = vsel %vm426, 1.5014094, 2.8329768
    %v503 = vmul.f32 %v499, %v455
    %v504 = vmul.f32 %v500, %v456
    %v505 = vadd.f32 %v501, %v503
    %v506 = vadd.f32 %v502, %v504
    %v507 = vand.u32 2147483647, %v399
    %v508 = vand.u32 2147483647, %v400
    %vm509 = vcmp.eq.f32.partialorder %v507, 1.0
    %vm510 = vcmp.eq.f32.partialorder %v508, 1.0
    %v511 = vmul.f32 %v399, inf
    %v512 = vmul.f32 %v400, inf
    %v513 = vmul.f32 %v505, %v399
    %v514 = vmul.f32 %v506, %v400
    %v515 = vsel %vm509, %v511, %v513
    %v516 = vsel %vm510, %v512, %v514
    %v517 = vmul.f32 %v515, 1.4142135
    %v518 = vmul.f32 %v516, 1.4142135
    %v519 = vmul.f32 %v384, 2.0
    %v520 = vsub.f32 %v519, 1.0
    %522 = vst [vmem:[#allocation1] ss:$4 sm:$0xff] %v520
    %v523 = vld.sshfl [vmem:[#allocation1] sm:$0xff pattern:$0x73625140]
    %v524 = vld.sshfl [vmem:[#allocation1 + $0x8] sm:$0xff pattern:$0x73625140]
    %v525 = vrot.slane %v523, 1
    %v526 = vrot.slane %v524, 1
    %v531 = vmul.f32 %v291, %v523
    %v532 = vmul.f32 %v291, %v524
    %v533 = vmul.f32 %v296, %v525
    %v534 = vmul.f32 %v296, %v526
    %v537 = vrot.slane %v517, 1
    %v538 = vrot.slane %v518, 1
    %v543 = vmul.f32 %v315, %v517
    %v544 = vmul.f32 %v315, %v518
    %v545 = vmul.f32 %v320, %v537
    %v546 = vmul.f32 %v320, %v538
    %v547 = vadd.f32 %v531, %v543
    %v548 = vadd.f32 %v532, %v544
    %v549 = vadd.f32 %v533, %v545
    %v550 = vadd.f32 %v534, %v546
    %s551 = scalar_lea.vmem %s2, 120
    %v552 = vld [vmem:[%s551] sm:$0xff]
    %v553 = vld [vmem:[%s551 + $0x8] sm:$0xff]
    %v554 = vld [vmem:[%s551 + $0x10] sm:$0xff]
    %v555 = vld [vmem:[%s551 + $0x18] sm:$0xff]
    %557 = vset.pattern.permute.xlu0 0
    %558 = vperm.xlu0 %557, %v552
    %v559 = vpop.permute.xlu0 %558
    %562 = vset.pattern.permute.xlu0 0
    %563 = vperm.xlu0 %562, %v553
    %v564 = vpop.permute.xlu0 %563
    %567 = vset.pattern.permute.xlu0 0
    %568 = vperm.xlu0 %567, %v554
    %v569 = vpop.permute.xlu0 %568
    %572 = vset.pattern.permute.xlu0 0
    %573 = vperm.xlu0 %572, %v555
    %v574 = vpop.permute.xlu0 %573
    %v576 = vperm.slane %v547, 0
    %v577 = vperm.slane %v548, 0
    %v578 = vperm.slane %v549, 0
    %v579 = vperm.slane %v550, 0
    %v580 = vmul.f32 %v559, %v576
    %v581 = vmul.f32 %v559, %v577
    %v582 = vmul.f32 %v564, %v576
    %v583 = vmul.f32 %v564, %v577
    %v584 = vmul.f32 %v569, %v576
    %v585 = vmul.f32 %v569, %v577
    %v586 = vmul.f32 %v574, %v576
    %v587 = vmul.f32 %v574, %v577
    %v588 = vmul.f32 %v559, %v578
    %v589 = vmul.f32 %v559, %v579
    %v590 = vmul.f32 %v564, %v578
    %v591 = vmul.f32 %v564, %v579
    %v592 = vmul.f32 %v569, %v578
    %v593 = vmul.f32 %v569, %v579
    %v594 = vmul.f32 %v574, %v578
    %v595 = vmul.f32 %v574, %v579
    %v596 = vadd.f32 %v367, %v580
    %v597 = vadd.f32 %v368, %v581
    %v598 = vadd.f32 %v369, %v582
    %v599 = vadd.f32 %v370, %v583
    %v600 = vadd.f32 %v371, %v584
    %v601 = vadd.f32 %v372, %v585
    %v602 = vadd.f32 %v373, %v586
    %v603 = vadd.f32 %v374, %v587
    %v604 = vadd.f32 %v375, %v588
    %v605 = vadd.f32 %v376, %v589
    %v606 = vadd.f32 %v377, %v590
    %v607 = vadd.f32 %v378, %v591
    %v608 = vadd.f32 %v379, %v592
    %v609 = vadd.f32 %v380, %v593
    %v610 = vadd.f32 %v381, %v594
    %v611 = vadd.f32 %v382, %v595
    %s612 = scalar_lea.vmem %s1, 8
    %v613 = vld [vmem:[%s612] sm:$0xf]
    %v614 = vrng
    %v615 = vrng
    %v616 = vshrl.u32 %v614, 9
    %v617 = vshrl.u32 %v615, 9
    %v618 = vor.u32 %v616, 1065353216
    %v619 = vor.u32 %v617, 1065353216
    %v622 = vsub.f32 %v618, 1.0
    %v623 = vsub.f32 %v619, 1.0
    %v624 = vmul.f32 %v622, 2.0
    %v625 = vmul.f32 %v623, 2.0
    %v626 = vadd.f32 %v624, -0.99999994
    %v627 = vadd.f32 %v625, -0.99999994
    %v628 = vmax.f32 %v626, -0.99999994
    %v629 = vmax.f32 %v627, -0.99999994
    %v630 = vsub.f32 0.0, %v628
    %v631 = vsub.f32 0.0, %v629
    %v632 = vmul.f32 %v628, %v630
    %v633 = vmul.f32 %v629, %v631
    %v634 = vadd.f32 %v632, 1.0
    %v635 = vlog2.pop %v634
    %v636 = vmul.f32 %v635, 0.6931472
    %v637 = vmul.f32 -0.5, %v632
    %v638 = vadd.f32 %v637, 1.0
    %v639 = vmul.f32 %v638, %v632
    %v640 = vand.u32 2147483647, %v632
    %vm641 = vcmp.lt.f32.partialorder %v640, 0.0004427343
    %v642 = vsel %vm641, %v639, %v636
    %v643 = vadd.f32 %v633, 1.0
    %v644 = vlog2.pop %v643
    %v645 = vmul.f32 %v644, 0.6931472
    %v646 = vmul.f32 -0.5, %v633
    %v647 = vadd.f32 %v646, 1.0
    %v648 = vmul.f32 %v647, %v633
    %v649 = vand.u32 2147483647, %v633
    %vm650 = vcmp.lt.f32.partialorder %v649, 0.0004427343
    %v651 = vsel %vm650, %v648, %v645
    %v652 = vsub.f32 0.0, %v642
    %v653 = vsub.f32 0.0, %v651
    %vm654 = vcmp.lt.f32.partialorder %v652, 5.0
    %vm655 = vcmp.lt.f32.partialorder %v653, 5.0
    %v656 = vsub.f32 %v652, 2.5
    %v657 = vsub.f32 %v653, 2.5
    %v658 = vrsqrt.pop %v652
    %v659 = vmul.f32 %v658, %v652
    %v660 = vmul.f32 %v659, %v658
    %v661 = vmul.f32 0.5, %v660
    %v662 = vsub.f32 1.5, %v661
    %v663 = vmul.f32 %v658, %v662
    %v664 = vmul.f32 %v652, %v663
    %vm665 = vcmp.eq.f32.partialorder %v652, inf
    %v666 = vsel %vm665, %v652, %v664
    %vm667 = vcmp.eq.f32.partialorder %v652, 0.0
    %v668 = vand.u32 %v652, 2147483648
    %v669 = vsel %vm667, %v668, %v666
    %v670 = vrsqrt.pop %v653
    %v671 = vmul.f32 %v670, %v653
    %v672 = vmul.f32 %v671, %v670
    %v673 = vmul.f32 0.5, %v672
    %v674 = vsub.f32 1.5, %v673
    %v675 = vmul.f32 %v670, %v674
    %v676 = vmul.f32 %v653, %v675
    %vm677 = vcmp.eq.f32.partialorder %v653, inf
    %v678 = vsel %vm677, %v653, %v676
    %vm679 = vcmp.eq.f32.partialorder %v653, 0.0
    %v680 = vand.u32 %v653, 2147483648
    %v681 = vsel %vm679, %v680, %v678
    %v682 = vsub.f32 %v669, 3.0
    %v683 = vsub.f32 %v681, 3.0
    %v684 = vsel %vm654, %v656, %v682
    %v685 = vsel %vm655, %v657, %v683
    %v686 = vsel %vm654, 2.8102264e-08, -0.00020021426
    %v687 = vsel %vm655, 2.8102264e-08, -0.00020021426
    %v688 = vsel %vm654, 3.4327394e-07, 0.00010095056
    %v689 = vsel %vm655, 3.4327394e-07, 0.00010095056
    %v690 = vmul.f32 %v686, %v684
    %v691 = vmul.f32 %v687, %v685
    %v692 = vadd.f32 %v688, %v690
    %v693 = vadd.f32 %v689, %v691
    %v694 = vsel %vm654, -3.5233877e-06, 0.0013493432
    %v695 = vsel %vm655, -3.5233877e-06, 0.0013493432
    %v696 = vmul.f32 %v692, %v684
    %v697 = vmul.f32 %v693, %v685
    %v698 = vadd.f32 %v694, %v696
    %v699 = vadd.f32 %v695, %v697
    %v700 = vsel %vm654, -4.3915065e-06, -0.0036734284
    %v701 = vsel %vm655, -4.3915065e-06, -0.0036734284
    %v702 = vmul.f32 %v698, %v684
    %v703 = vmul.f32 %v699, %v685
    %v704 = vadd.f32 %v700, %v702
    %v705 = vadd.f32 %v701, %v703
    %v706 = vsel %vm654, 0.00021858087, 0.0057395077
    %v707 = vsel %vm655, 0.00021858087, 0.0057395077
    %v708 = vmul.f32 %v704, %v684
    %v709 = vmul.f32 %v705, %v685
    %v710 = vadd.f32 %v706, %v708
    %v711 = vadd.f32 %v707, %v709
    %v712 = vsel %vm654, -0.001253725, -0.0076224613
    %v713 = vsel %vm655, -0.001253725, -0.0076224613
    %v714 = vmul.f32 %v710, %v684
    %v715 = vmul.f32 %v711, %v685
    %v716 = vadd.f32 %v712, %v714
    %v717 = vadd.f32 %v713, %v715
    %v718 = vsel %vm654, -0.0041776816, 0.0094388705
    %v719 = vsel %vm655, -0.0041776816, 0.0094388705
    %v720 = vmul.f32 %v716, %v684
    %v721 = vmul.f32 %v717, %v685
    %v722 = vadd.f32 %v718, %v720
    %v723 = vadd.f32 %v719, %v721
    %v724 = vsel %vm654, 0.24664073, 1.001674
    %v725 = vsel %vm655, 0.24664073, 1.001674
    %v726 = vmul.f32 %v722, %v684
    %v727 = vmul.f32 %v723, %v685
    %v728 = vadd.f32 %v724, %v726
    %v729 = vadd.f32 %v725, %v727
    %v730 = vsel %vm654, 1.5014094, 2.8329768
    %v731 = vsel %vm655, 1.5014094, 2.8329768
    %v732 = vmul.f32 %v728, %v684
    %v733 = vmul.f32 %v729, %v685
    %v734 = vadd.f32 %v730, %v732
    %v735 = vadd.f32 %v731, %v733
    %v736 = vand.u32 2147483647, %v628
    %v737 = vand.u32 2147483647, %v629
    %vm738 = vcmp.eq.f32.partialorder %v736, 1.0
    %vm739 = vcmp.eq.f32.partialorder %v737, 1.0
    %v740 = vmul.f32 %v628, inf
    %v741 = vmul.f32 %v629, inf
    %v742 = vmul.f32 %v734, %v628
    %v743 = vmul.f32 %v735, %v629
    %v744 = vsel %vm738, %v740, %v742
    %v745 = vsel %vm739, %v741, %v743
    %v746 = vmul.f32 %v744, 1.4142135
    %v747 = vmul.f32 %v745, 1.4142135
    %v748 = vmul.f32 %v613, 2.0
    %v749 = vsub.f32 %v748, 1.0
    %751 = vst [vmem:[#allocation1] ss:$4 sm:$0xff] %v749
    %v752 = vld.sshfl [vmem:[#allocation1] sm:$0xff pattern:$0x73625140]
    %v753 = vld.sshfl [vmem:[#allocation1 + $0x8] sm:$0xff pattern:$0x73625140]
    %v754 = vrot.slane %v752, 1
    %v755 = vrot.slane %v753, 1
    %v760 = vmul.f32 %v291, %v752
    %v761 = vmul.f32 %v291, %v753
    %v762 = vmul.f32 %v296, %v754
    %v763 = vmul.f32 %v296, %v755
    %v766 = vrot.slane %v746, 1
    %v767 = vrot.slane %v747, 1
    %v772 = vmul.f32 %v315, %v746
    %v773 = vmul.f32 %v315, %v747
    %v774 = vmul.f32 %v320, %v766
    %v775 = vmul.f32 %v320, %v767
    %v776 = vadd.f32 %v760, %v772
    %v777 = vadd.f32 %v761, %v773
    %v778 = vadd.f32 %v762, %v774
    %v779 = vadd.f32 %v763, %v775
    %s780 = scalar_lea.vmem %s2, 160
    %v781 = vld [vmem:[%s780] sm:$0xff]
    %v782 = vld [vmem:[%s780 + $0x8] sm:$0xff]
    %v783 = vld [vmem:[%s780 + $0x10] sm:$0xff]
    %v784 = vld [vmem:[%s780 + $0x18] sm:$0xff]
    %786 = vset.pattern.permute.xlu0 0
    %787 = vperm.xlu0 %786, %v781
    %v788 = vpop.permute.xlu0 %787
    %791 = vset.pattern.permute.xlu0 0
    %792 = vperm.xlu0 %791, %v782
    %v793 = vpop.permute.xlu0 %792
    %796 = vset.pattern.permute.xlu0 0
    %797 = vperm.xlu0 %796, %v783
    %v798 = vpop.permute.xlu0 %797
    %801 = vset.pattern.permute.xlu0 0
    %802 = vperm.xlu0 %801, %v784
    %v803 = vpop.permute.xlu0 %802
    %v805 = vperm.slane %v776, 0
    %v806 = vperm.slane %v777, 0
    %v807 = vperm.slane %v778, 0
    %v808 = vperm.slane %v779, 0
    %v809 = vmul.f32 %v788, %v805
    %v810 = vmul.f32 %v788, %v806
    %v811 = vmul.f32 %v793, %v805
    %v812 = vmul.f32 %v793, %v806
    %v813 = vmul.f32 %v798, %v805
    %v814 = vmul.f32 %v798, %v806
    %v815 = vmul.f32 %v803, %v805
    %v816 = vmul.f32 %v803, %v806
    %v817 = vmul.f32 %v788, %v807
    %v818 = vmul.f32 %v788, %v808
    %v819 = vmul.f32 %v793, %v807
    %v820 = vmul.f32 %v793, %v808
    %v821 = vmul.f32 %v798, %v807
    %v822 = vmul.f32 %v798, %v808
    %v823 = vmul.f32 %v803, %v807
    %v824 = vmul.f32 %v803, %v808
    %v825 = vadd.f32 %v596, %v809
    %v826 = vadd.f32 %v597, %v810
    %v827 = vadd.f32 %v598, %v811
    %v828 = vadd.f32 %v599, %v812
    %v829 = vadd.f32 %v600, %v813
    %v830 = vadd.f32 %v601, %v814
    %v831 = vadd.f32 %v602, %v815
    %v832 = vadd.f32 %v603, %v816
    %v833 = vadd.f32 %v604, %v817
    %v834 = vadd.f32 %v605, %v818
    %v835 = vadd.f32 %v606, %v819
    %v836 = vadd.f32 %v607, %v820
    %v837 = vadd.f32 %v608, %v821
    %v838 = vadd.f32 %v609, %v822
    %v839 = vadd.f32 %v610, %v823
    %v840 = vadd.f32 %v611, %v824
    %842 = vset.pattern.permute.xlu0 0
    %843 = vperm.xlu0 %842, %v139
    %v844 = vpop.permute.xlu0 %843
    %847 = vset.pattern.permute.xlu0 0
    %848 = vperm.xlu0 %847, %v140
    %v849 = vpop.permute.xlu0 %848
    %852 = vset.pattern.permute.xlu0 0
    %853 = vperm.xlu0 %852, %v141
    %v854 = vpop.permute.xlu0 %853
    %857 = vset.pattern.permute.xlu0 0
    %858 = vperm.xlu0 %857, %v142
    %v859 = vpop.permute.xlu0 %858
    %862 = vset.pattern.permute.xlu0 0
    %863 = vperm.xlu0 %862, %v143
    %v864 = vpop.permute.xlu0 %863
    %867 = vset.pattern.permute.xlu0 0
    %868 = vperm.xlu0 %867, %v144
    %v869 = vpop.permute.xlu0 %868
    %872 = vset.pattern.permute.xlu0 0
    %873 = vperm.xlu0 %872, %v145
    %v874 = vpop.permute.xlu0 %873
    %877 = vset.pattern.permute.xlu0 0
    %878 = vperm.xlu0 %877, %v146
    %v879 = vpop.permute.xlu0 %878
    %v881 = vadd.f32 %v825, %v844
    %v882 = vadd.f32 %v826, %v844
    %v883 = vadd.f32 %v827, %v849
    %v884 = vadd.f32 %v828, %v849
    %v885 = vadd.f32 %v829, %v854
    %v886 = vadd.f32 %v830, %v854
    %v887 = vadd.f32 %v831, %v859
    %v888 = vadd.f32 %v832, %v859
    %v889 = vadd.f32 %v833, %v864
    %v890 = vadd.f32 %v834, %v864
    %v891 = vadd.f32 %v835, %v869
    %v892 = vadd.f32 %v836, %v869
    %v893 = vadd.f32 %v837, %v874
    %v894 = vadd.f32 %v838, %v874
    %v895 = vadd.f32 %v839, %v879
    %v896 = vadd.f32 %v840, %v879
    %v897 = vmul.f32 %v881, %v881
    %v898 = vmul.f32 %v882, %v882
    %v899 = vmul.f32 %v883, %v883
    %v900 = vmul.f32 %v884, %v884
    %v901 = vmul.f32 %v885, %v885
    %v902 = vmul.f32 %v886, %v886
    %v903 = vmul.f32 %v887, %v887
    %v904 = vmul.f32 %v888, %v888
    %v905 = vmul.f32 %v889, %v889
    %v906 = vmul.f32 %v890, %v890
    %v907 = vmul.f32 %v891, %v891
    %v908 = vmul.f32 %v892, %v892
    %v909 = vmul.f32 %v893, %v893
    %v910 = vmul.f32 %v894, %v894
    %v911 = vmul.f32 %v895, %v895
    %v912 = vmul.f32 %v896, %v896
    %v913 = vmul.f32 %v881, %v897
    %v914 = vmul.f32 %v882, %v898
    %v915 = vmul.f32 %v883, %v899
    %v916 = vmul.f32 %v884, %v900
    %v917 = vmul.f32 %v885, %v901
    %v918 = vmul.f32 %v886, %v902
    %v919 = vmul.f32 %v887, %v903
    %v920 = vmul.f32 %v888, %v904
    %v921 = vmul.f32 %v889, %v905
    %v922 = vmul.f32 %v890, %v906
    %v923 = vmul.f32 %v891, %v907
    %v924 = vmul.f32 %v892, %v908
    %v925 = vmul.f32 %v893, %v909
    %v926 = vmul.f32 %v894, %v910
    %v927 = vmul.f32 %v895, %v911
    %v928 = vmul.f32 %v896, %v912
    %v929 = vmul.f32 %v913, 0.044715
    %v930 = vmul.f32 %v914, 0.044715
    %v931 = vmul.f32 %v915, 0.044715
    %v932 = vmul.f32 %v916, 0.044715
    %v933 = vmul.f32 %v917, 0.044715
    %v934 = vmul.f32 %v918, 0.044715
    %v935 = vmul.f32 %v919, 0.044715
    %v936 = vmul.f32 %v920, 0.044715
    %v937 = vmul.f32 %v921, 0.044715
    %v938 = vmul.f32 %v922, 0.044715
    %v939 = vmul.f32 %v923, 0.044715
    %v940 = vmul.f32 %v924, 0.044715
    %v941 = vmul.f32 %v925, 0.044715
    %v942 = vmul.f32 %v926, 0.044715
    %v943 = vmul.f32 %v927, 0.044715
    %v944 = vmul.f32 %v928, 0.044715
    %v945 = vadd.f32 %v881, %v929
    %v946 = vadd.f32 %v882, %v930
    %v947 = vadd.f32 %v883, %v931
    %v948 = vadd.f32 %v884, %v932
    %v949 = vadd.f32 %v885, %v933
    %v950 = vadd.f32 %v886, %v934
    %v951 = vadd.f32 %v887, %v935
    %v952 = vadd.f32 %v888, %v936
    %v953 = vadd.f32 %v889, %v937
    %v954 = vadd.f32 %v890, %v938
    %v955 = vadd.f32 %v891, %v939
    %v956 = vadd.f32 %v892, %v940
    %v957 = vadd.f32 %v893, %v941
    %v958 = vadd.f32 %v894, %v942
    %v959 = vadd.f32 %v895, %v943
    %v960 = vadd.f32 %v896, %v944
    %v961 = vmul.f32 %v945, 0.7978846
    %v962 = vmul.f32 %v946, 0.7978846
    %v963 = vmul.f32 %v947, 0.7978846
    %v964 = vmul.f32 %v948, 0.7978846
    %v965 = vmul.f32 %v949, 0.7978846
    %v966 = vmul.f32 %v950, 0.7978846
    %v967 = vmul.f32 %v951, 0.7978846
    %v968 = vmul.f32 %v952, 0.7978846
    %v969 = vmul.f32 %v953, 0.7978846
    %v970 = vmul.f32 %v954, 0.7978846
    %v971 = vmul.f32 %v955, 0.7978846
    %v972 = vmul.f32 %v956, 0.7978846
    %v973 = vmul.f32 %v957, 0.7978846
    %v974 = vmul.f32 %v958, 0.7978846
    %v975 = vmul.f32 %v959, 0.7978846
    %v976 = vmul.f32 %v960, 0.7978846
    %v977 = vtanh.pop %v961
    %v978 = vtanh.pop %v962
    %v979 = vtanh.pop %v963
    %v980 = vtanh.pop %v964
    %v981 = vtanh.pop %v965
    %v982 = vtanh.pop %v966
    %v983 = vtanh.pop %v967
    %v984 = vtanh.pop %v968
    %v985 = vtanh.pop %v969
    %v986 = vtanh.pop %v970
    %v987 = vtanh.pop %v971
    %v988 = vtanh.pop %v972
    %v989 = vtanh.pop %v973
    %v990 = vtanh.pop %v974
    %v991 = vtanh.pop %v975
    %v992 = vtanh.pop %v976
    %v993 = vadd.f32 %v977, 1.0
    %v994 = vadd.f32 %v978, 1.0
    %v995 = vadd.f32 %v979, 1.0
    %v996 = vadd.f32 %v980, 1.0
    %v997 = vadd.f32 %v981, 1.0
    %v998 = vadd.f32 %v982, 1.0
    %v999 = vadd.f32 %v983, 1.0
    %v1000 = vadd.f32 %v984, 1.0
    %v1001 = vadd.f32 %v985, 1.0
    %v1002 = vadd.f32 %v986, 1.0
    %v1003 = vadd.f32 %v987, 1.0
    %v1004 = vadd.f32 %v988, 1.0
    %v1005 = vadd.f32 %v989, 1.0
    %v1006 = vadd.f32 %v990, 1.0
    %v1007 = vadd.f32 %v991, 1.0
    %v1008 = vadd.f32 %v992, 1.0
    %v1009 = vmul.f32 %v993, 0.5
    %v1010 = vmul.f32 %v994, 0.5
    %v1011 = vmul.f32 %v995, 0.5
    %v1012 = vmul.f32 %v996, 0.5
    %v1013 = vmul.f32 %v997, 0.5
    %v1014 = vmul.f32 %v998, 0.5
    %v1015 = vmul.f32 %v999, 0.5
    %v1016 = vmul.f32 %v1000, 0.5
    %v1017 = vmul.f32 %v1001, 0.5
    %v1018 = vmul.f32 %v1002, 0.5
    %v1019 = vmul.f32 %v1003, 0.5
    %v1020 = vmul.f32 %v1004, 0.5
    %v1021 = vmul.f32 %v1005, 0.5
    %v1022 = vmul.f32 %v1006, 0.5
    %v1023 = vmul.f32 %v1007, 0.5
    %v1024 = vmul.f32 %v1008, 0.5
    %v1025 = vmul.f32 %v881, %v1009
    %v1026 = vmul.f32 %v882, %v1010
    %v1027 = vmul.f32 %v883, %v1011
    %v1028 = vmul.f32 %v884, %v1012
    %v1029 = vmul.f32 %v885, %v1013
    %v1030 = vmul.f32 %v886, %v1014
    %v1031 = vmul.f32 %v887, %v1015
    %v1032 = vmul.f32 %v888, %v1016
    %v1033 = vmul.f32 %v889, %v1017
    %v1034 = vmul.f32 %v890, %v1018
    %v1035 = vmul.f32 %v891, %v1019
    %v1036 = vmul.f32 %v892, %v1020
    %v1037 = vmul.f32 %v893, %v1021
    %v1038 = vmul.f32 %v894, %v1022
    %v1039 = vmul.f32 %v895, %v1023
    %v1040 = vmul.f32 %v896, %v1024
    %s1041 = scalar_lea.vmem %s2, 200
    %v1042 = vld [vmem:[%s1041] sm:$0xff]
    %v1043 = vld [vmem:[%s1041 + $0x8] sm:$0xff]
    %v1044 = vld [vmem:[%s1041 + $0x10] sm:$0xff]
    %v1045 = vld [vmem:[%s1041 + $0x18] sm:$0xff]
    %1047 = vset.pattern.permute.xlu0 0
    %1048 = vperm.xlu0 %1047, %v1042
    %v1049 = vpop.permute.xlu0 %1048
    %1052 = vset.pattern.permute.xlu0 0
    %1053 = vperm.xlu0 %1052, %v1043
    %v1054 = vpop.permute.xlu0 %1053
    %1057 = vset.pattern.permute.xlu0 0
    %1058 = vperm.xlu0 %1057, %v1044
    %v1059 = vpop.permute.xlu0 %1058
    %1062 = vset.pattern.permute.xlu0 0
    %1063 = vperm.xlu0 %1062, %v1045
    %v1064 = vpop.permute.xlu0 %1063
    %v1066 = vmul.f32 %v1049, %v1025
    %v1067 = vmul.f32 %v1049, %v1026
    %v1068 = vmul.f32 %v1054, %v1027
    %v1069 = vmul.f32 %v1054, %v1028
    %v1070 = vmul.f32 %v1059, %v1029
    %v1071 = vmul.f32 %v1059, %v1030
    %v1072 = vmul.f32 %v1064, %v1031
    %v1073 = vmul.f32 %v1064, %v1032
    %v1074 = vmul.f32 %v1049, %v1033
    %v1075 = vmul.f32 %v1049, %v1034
    %v1076 = vmul.f32 %v1054, %v1035
    %v1077 = vmul.f32 %v1054, %v1036
    %v1078 = vmul.f32 %v1059, %v1037
    %v1079 = vmul.f32 %v1059, %v1038
    %v1080 = vmul.f32 %v1064, %v1039
    %v1081 = vmul.f32 %v1064, %v1040
    %v1082 = vadd.f32 %v1066, %v1068
    %v1083 = vadd.f32 %v1082, %v1070
    %v1084 = vadd.f32 %v1083, %v1072
    %v1085 = vrot.slane %v1084, 4
    %v1086 = vadd.f32 %v1084, %v1085
    %v1087 = vrot.slane %v1086, 2
    %v1088 = vadd.f32 %v1086, %v1087
    %v1089 = vrot.slane %v1088, 1
    %v1090 = vadd.f32 %v1088, %v1089
    %v1091 = vadd.f32 %v1067, %v1069
    %v1092 = vadd.f32 %v1091, %v1071
    %v1093 = vadd.f32 %v1092, %v1073
    %v1094 = vrot.slane %v1093, 4
    %v1095 = vadd.f32 %v1093, %v1094
    %v1096 = vrot.slane %v1095, 2
    %v1097 = vadd.f32 %v1095, %v1096
    %v1098 = vrot.slane %v1097, 1
    %v1099 = vadd.f32 %v1097, %v1098
    %v1100 = vadd.f32 %v1074, %v1076
    %v1101 = vadd.f32 %v1100, %v1078
    %v1102 = vadd.f32 %v1101, %v1080
    %v1103 = vrot.slane %v1102, 4
    %v1104 = vadd.f32 %v1102, %v1103
    %v1105 = vrot.slane %v1104, 2
    %v1106 = vadd.f32 %v1104, %v1105
    %v1107 = vrot.slane %v1106, 1
    %v1108 = vadd.f32 %v1106, %v1107
    %v1109 = vadd.f32 %v1075, %v1077
    %v1110 = vadd.f32 %v1109, %v1079
    %v1111 = vadd.f32 %v1110, %v1081
    %v1112 = vrot.slane %v1111, 4
    %v1113 = vadd.f32 %v1111, %v1112
    %v1114 = vrot.slane %v1113, 2
    %v1115 = vadd.f32 %v1113, %v1114
    %v1116 = vrot.slane %v1115, 1
    %v1117 = vadd.f32 %v1115, %v1116
    %v1118 = vsub.f32 %v1090, %v284
    %v1119 = vsub.f32 %v1099, %v285
    %v1120 = vsub.f32 %v1108, %v324
    %v1121 = vsub.f32 %v1117, %v325
    %v1122 = vmul.f32 %v1118, %v1118
    %v1123 = vmul.f32 %v1119, %v1119
    %v1124 = vmul.f32 %v1120, %v1120
    %v1125 = vmul.f32 %v1121, %v1121
    %s1126 = scalar_lea.vmem %s2, 240
    %v1127 = vld [vmem:[%s1126] sm:$0xff]
    %v1128 = vld [vmem:[%s1126 + $0x8] sm:$0xff]
    %v1129 = vld [vmem:[%s1126 + $0x10] sm:$0xff]
    %v1130 = vld [vmem:[%s1126 + $0x18] sm:$0xff]
    %1132 = vset.pattern.permute.xlu0 0
    %1133 = vperm.xlu0 %1132, %v1127
    %v1134 = vpop.permute.xlu0 %1133
    %1137 = vset.pattern.permute.xlu0 0
    %1138 = vperm.xlu0 %1137, %v1128
    %v1139 = vpop.permute.xlu0 %1138
    %1142 = vset.pattern.permute.xlu0 0
    %1143 = vperm.xlu0 %1142, %v1129
    %v1144 = vpop.permute.xlu0 %1143
    %1147 = vset.pattern.permute.xlu0 0
    %1148 = vperm.xlu0 %1147, %v1130
    %v1149 = vpop.permute.xlu0 %1148
    %v1151 = vmul.f32 %v1134, %v1025
    %v1152 = vmul.f32 %v1134, %v1026
    %v1153 = vmul.f32 %v1139, %v1027
    %v1154 = vmul.f32 %v1139, %v1028
    %v1155 = vmul.f32 %v1144, %v1029
    %v1156 = vmul.f32 %v1144, %v1030
    %v1157 = vmul.f32 %v1149, %v1031
    %v1158 = vmul.f32 %v1149, %v1032
    %v1159 = vmul.f32 %v1134, %v1033
    %v1160 = vmul.f32 %v1134, %v1034
    %v1161 = vmul.f32 %v1139, %v1035
    %v1162 = vmul.f32 %v1139, %v1036
    %v1163 = vmul.f32 %v1144, %v1037
    %v1164 = vmul.f32 %v1144, %v1038
    %v1165 = vmul.f32 %v1149, %v1039
    %v1166 = vmul.f32 %v1149, %v1040
    %v1167 = vadd.f32 %v1151, %v1153
    %v1168 = vadd.f32 %v1167, %v1155
    %v1169 = vadd.f32 %v1168, %v1157
    %v1170 = vrot.slane %v1169, 4
    %v1171 = vadd.f32 %v1169, %v1170
    %v1172 = vrot.slane %v1171, 2
    %v1173 = vadd.f32 %v1171, %v1172
    %v1174 = vrot.slane %v1173, 1
    %v1175 = vadd.f32 %v1173, %v1174
    %v1176 = vadd.f32 %v1152, %v1154
    %v1177 = vadd.f32 %v1176, %v1156
    %v1178 = vadd.f32 %v1177, %v1158
    %v1179 = vrot.slane %v1178, 4
    %v1180 = vadd.f32 %v1178, %v1179
    %v1181 = vrot.slane %v1180, 2
    %v1182 = vadd.f32 %v1180, %v1181
    %v1183 = vrot.slane %v1182, 1
    %v1184 = vadd.f32 %v1182, %v1183
    %v1185 = vadd.f32 %v1159, %v1161
    %v1186 = vadd.f32 %v1185, %v1163
    %v1187 = vadd.f32 %v1186, %v1165
    %v1188 = vrot.slane %v1187, 4
    %v1189 = vadd.f32 %v1187, %v1188
    %v1190 = vrot.slane %v1189, 2
    %v1191 = vadd.f32 %v1189, %v1190
    %v1192 = vrot.slane %v1191, 1
    %v1193 = vadd.f32 %v1191, %v1192
    %v1194 = vadd.f32 %v1160, %v1162
    %v1195 = vadd.f32 %v1194, %v1164
    %v1196 = vadd.f32 %v1195, %v1166
    %v1197 = vrot.slane %v1196, 4
    %v1198 = vadd.f32 %v1196, %v1197
    %v1199 = vrot.slane %v1198, 2
    %v1200 = vadd.f32 %v1198, %v1199
    %v1201 = vrot.slane %v1200, 1
    %v1202 = vadd.f32 %v1200, %v1201
    %v1203 = vsub.f32 %v1175, %v517
    %v1204 = vsub.f32 %v1184, %v518
    %v1205 = vsub.f32 %v1193, %v537
    %v1206 = vsub.f32 %v1202, %v538
    %v1207 = vmul.f32 %v1203, %v1203
    %v1208 = vmul.f32 %v1204, %v1204
    %v1209 = vmul.f32 %v1205, %v1205
    %v1210 = vmul.f32 %v1206, %v1206
    %v1211 = vadd.f32 %v1122, %v1207
    %v1212 = vadd.f32 %v1123, %v1208
    %v1213 = vadd.f32 %v1124, %v1209
    %v1214 = vadd.f32 %v1125, %v1210
    %s1215 = scalar_lea.vmem %s2, 280
    %v1216 = vld [vmem:[%s1215] sm:$0xff]
    %v1217 = vld [vmem:[%s1215 + $0x8] sm:$0xff]
    %v1218 = vld [vmem:[%s1215 + $0x10] sm:$0xff]
    %v1219 = vld [vmem:[%s1215 + $0x18] sm:$0xff]
    %1221 = vset.pattern.permute.xlu0 0
    %1222 = vperm.xlu0 %1221, %v1216
    %v1223 = vpop.permute.xlu0 %1222
    %1226 = vset.pattern.permute.xlu0 0
    %1227 = vperm.xlu0 %1226, %v1217
    %v1228 = vpop.permute.xlu0 %1227
    %1231 = vset.pattern.permute.xlu0 0
    %1232 = vperm.xlu0 %1231, %v1218
    %v1233 = vpop.permute.xlu0 %1232
    %1236 = vset.pattern.permute.xlu0 0
    %1237 = vperm.xlu0 %1236, %v1219
    %v1238 = vpop.permute.xlu0 %1237
    %v1240 = vmul.f32 %v1223, %v1025
    %v1241 = vmul.f32 %v1223, %v1026
    %v1242 = vmul.f32 %v1228, %v1027
    %v1243 = vmul.f32 %v1228, %v1028
    %v1244 = vmul.f32 %v1233, %v1029
    %v1245 = vmul.f32 %v1233, %v1030
    %v1246 = vmul.f32 %v1238, %v1031
    %v1247 = vmul.f32 %v1238, %v1032
    %v1248 = vmul.f32 %v1223, %v1033
    %v1249 = vmul.f32 %v1223, %v1034
    %v1250 = vmul.f32 %v1228, %v1035
    %v1251 = vmul.f32 %v1228, %v1036
    %v1252 = vmul.f32 %v1233, %v1037
    %v1253 = vmul.f32 %v1233, %v1038
    %v1254 = vmul.f32 %v1238, %v1039
    %v1255 = vmul.f32 %v1238, %v1040
    %v1256 = vadd.f32 %v1240, %v1242
    %v1257 = vadd.f32 %v1256, %v1244
    %v1258 = vadd.f32 %v1257, %v1246
    %v1259 = vrot.slane %v1258, 4
    %v1260 = vadd.f32 %v1258, %v1259
    %v1261 = vrot.slane %v1260, 2
    %v1262 = vadd.f32 %v1260, %v1261
    %v1263 = vrot.slane %v1262, 1
    %v1264 = vadd.f32 %v1262, %v1263
    %v1265 = vadd.f32 %v1241, %v1243
    %v1266 = vadd.f32 %v1265, %v1245
    %v1267 = vadd.f32 %v1266, %v1247
    %v1268 = vrot.slane %v1267, 4
    %v1269 = vadd.f32 %v1267, %v1268
    %v1270 = vrot.slane %v1269, 2
    %v1271 = vadd.f32 %v1269, %v1270
    %v1272 = vrot.slane %v1271, 1
    %v1273 = vadd.f32 %v1271, %v1272
    %v1274 = vadd.f32 %v1248, %v1250
    %v1275 = vadd.f32 %v1274, %v1252
    %v1276 = vadd.f32 %v1275, %v1254
    %v1277 = vrot.slane %v1276, 4
    %v1278 = vadd.f32 %v1276, %v1277
    %v1279 = vrot.slane %v1278, 2
    %v1280 = vadd.f32 %v1278, %v1279
    %v1281 = vrot.slane %v1280, 1
    %v1282 = vadd.f32 %v1280, %v1281
    %v1283 = vadd.f32 %v1249, %v1251
    %v1284 = vadd.f32 %v1283, %v1253
    %v1285 = vadd.f32 %v1284, %v1255
    %v1286 = vrot.slane %v1285, 4
    %v1287 = vadd.f32 %v1285, %v1286
    %v1288 = vrot.slane %v1287, 2
    %v1289 = vadd.f32 %v1287, %v1288
    %v1290 = vrot.slane %v1289, 1
    %v1291 = vadd.f32 %v1289, %v1290
    %v1292 = vsub.f32 %v1264, %v746
    %v1293 = vsub.f32 %v1273, %v747
    %v1294 = vsub.f32 %v1282, %v766
    %v1295 = vsub.f32 %v1291, %v767
    %v1296 = vmul.f32 %v1292, %v1292
    %v1297 = vmul.f32 %v1293, %v1293
    %v1298 = vmul.f32 %v1294, %v1294
    %v1299 = vmul.f32 %v1295, %v1295
    %v1300 = vadd.f32 %v1211, %v1296
    %v1301 = vadd.f32 %v1212, %v1297
    %v1302 = vadd.f32 %v1213, %v1298
    %v1303 = vadd.f32 %v1214, %v1299
    %v1308 = vrot.slane %v1302, 7
    %vm1309 = vcmask 1041409
    %v1310 = vsel %vm1309, %v1308, %v1300
    %v1311 = vrot.slane %v1303, 7
    %v1312 = vsel %vm1309, %v1311, %v1301
    %vm1315 = vcmask 1041408
    %v1316 = vsel %vm1315, %v1310, 0.0
    %v1317 = vsel %vm1315, %v1312, 0.0
    %v1318 = vadd.f32 %v1316, %v1317
    %1319 = vadd.xlane.f32.xlu0 %v1318
    %v1320 = vpop.xlane.xlu0 %1319
    %v1321 = vrot.slane %v1320, 4
    %v1322 = vadd.f32 %v1320, %v1321
    %v1323 = vrot.slane %v1322, 2
    %v1324 = vadd.f32 %v1322, %v1323
    %v1325 = vrot.slane %v1324, 1
    %v1326 = vadd.f32 %v1324, %v1325
    %s1327 = vtos %v1326
    %s1328 = smul.f32 %s1327, 0.0006510417
    %s1329 = scalar_lea.smem [#allocation3], 0
    %1330 = sst [smem:[%s1329]] %s1328
    // Predicated region
    $region14: #{imagen_forward.3} parent=1 // pred_check
      _
    $region15: #{imagen_forward.3} parent=1 // pred_check_branch
      %1332 = sbr.rel (0) target = $region17
    $region16: #{imagen_forward.3} parent=1 // pred_region
      %1334 = vsyncadd [#allocation4], 0
      %s1336 = sshll.u32 %s3, 4
      %s1337 = int_to_ptr.hbm [resolvable:$true] %s1336
      %1339 = dma.smem_to_hbm [#allocation3], 16, %s1337, [#allocation4]
    $region17: #{imagen_forward.3} parent=1 // pred_fallthru
      _
    // Predicated region
    $region18: #{imagen_forward.3} parent=1 // pred_check
      _
    $region19: #{imagen_forward.3} parent=1 // pred_check_branch
      %1341 = sbr.rel (0) target = $region21
    $region20: #{imagen_forward.3} parent=1 // pred_region
      %1343 = dma.done [#allocation4], 16
    $region21: #{imagen_forward.3} parent=1 // pred_fallthru
      _
    %1344 = sfence
    %1345 = vsyncpa [#allocation4], 1

// kernel: imagen_forward.3
$region0: #{imagen_forward.3}
  #allocation0 [shape = 'u32[]', space=smem, size = 0x4, offset = 0x4, fixed_abs, tag = 'smem constant byte address 0x4 - core index']
  #allocation1 [shape = 'u32[72,128]{1,0:T(1,128)}', space=vmem, size = 0x9000, scoped, tag = 'internal scratch']
  #allocation2 [shape = 's32[1]{0:T(128)S(6)}', space=smem, size = 0x200, scoped, tag = 'scoped memory for imagen_forward.3']
  %s0 = inlined_call_operand.<no memory space> [shape: s32[1], index: 0, kind: input, shape index: {}]
  %s1 = inlined_call_operand.vmem [shape: f32[6,2,256], index: 1, kind: input, shape index: {}]
  %s2 = inlined_call_operand.vmem [shape: f32[8,34,1], index: 2, kind: input, shape index: {}]
  %s3 = inlined_call_operand.hbm [shape: f32[1,1], index: 3, kind: output, shape index: {}]
  %s4 = sld [smem:[#allocation0]]
  $region22: #{imagen_forward.3} parent=0
    _
  %s6 = ssub.s32 1, %s4
  %s7 = scalar_select 0, %s6, %s4
  %8 = sst [smem:[#allocation2]] %s0
  $region1: #{imagen_forward.3} parent=0
    #allocation3 [shape = 'u8[512]{0}', space=smem, size = 0x200, scoped, tag = 'output window, operand 0, single buffered']
    #allocation4 [shape = 's32[1]{0}', space=sflag, size = 0x4, scoped, tag = 'scoped memory for imagen_forward.3']
    %9 = vsyncpa [#allocation4], 0
    // Predicated region
    $region2: #{imagen_forward.3} parent=1 // pred_check
      _
    $region3: #{imagen_forward.3} parent=1 // pred_check_branch
      %11 = sbr.rel (0) target = $region5
    $region4: #{imagen_forward.3} parent=1 // pred_region
      _
    $region5: #{imagen_forward.3} parent=1 // pred_fallthru
      _
    // Predicated region
    $region6: #{imagen_forward.3} parent=1 // pred_check
      _
    $region7: #{imagen_forward.3} parent=1 // pred_check_branch
      %13 = sbr.rel (0) target = $region9
    $region8: #{imagen_forward.3} parent=1 // pred_region
      _
    $region9: #{imagen_forward.3} parent=1 // pred_fallthru
      _
    // Predicated region
    $region10: #{imagen_forward.3} parent=1 // pred_check
      _
    $region11: #{imagen_forward.3} parent=1 // pred_check_branch
      %15 = sbr.rel (0) target = $region13
    $region12: #{imagen_forward.3} parent=1 // pred_region
      _
    $region13: #{imagen_forward.3} parent=1 // pred_fallthru
      _
    %v16 = vld [vmem:[%s2] sm:$0xff]
    %v17 = vld [vmem:[%s2 + $0x8] sm:$0xff]
    %v18 = vld [vmem:[%s2 + $0x10] sm:$0xff]
    %v19 = vld [vmem:[%s2 + $0x18] sm:$0xff]
    %v20 = vld [vmem:[%s2 + $0x28] sm:$0xff]
    %v21 = vld [vmem:[%s2 + $0x30] sm:$0xff]
    %v22 = vld [vmem:[%s2 + $0x38] sm:$0xff]
    %v23 = vld [vmem:[%s2 + $0x40] sm:$0xff]
    %v24 = vld [vmem:[%s2 + $0x20] sm:$0x1]
    %v25 = vld [vmem:[%s2 + $0x48] sm:$0x1]
    %v26 = vld [vmem:[%s2 + $0x21] sm:$0x1]
    %v27 = vld [vmem:[%s2 + $0x49] sm:$0x1]
    %v28 = vld [vmem:[%s1] sm:$0xf]
    %s29 = scalar_lea.vmem %s1, 12
    %v30 = vld [vmem:[%s29] sm:$0xf]
    %v31 = vmul.f32 %v28, 2.0
    %v32 = vsub.f32 %v31, 1.0
    %34 = vset.pattern.permute.xlu0 0
    %35 = vperm.xlu0 %34, %v24
    %v36 = vpop.permute.xlu0 %35
    %39 = vset.pattern.permute.xlu0 0
    %40 = vperm.xlu0 %39, %v25
    %v41 = vpop.permute.xlu0 %40
    %44 = vst [vmem:[#allocation1] ss:$4 sm:$0xff] %v32
    %v45 = vld.sshfl [vmem:[#allocation1] sm:$0xff pattern:$0x73625140]
    %v46 = vld.sshfl [vmem:[#allocation1 + $0x8] sm:$0xff pattern:$0x73625140]
    %v47 = vrot.slane %v45, 1
    %v48 = vrot.slane %v46, 1
    %v53 = vmul.f32 %v36, %v45
    %v54 = vmul.f32 %v36, %v46
    %v55 = vmul.f32 %v41, %v47
    %v56 = vmul.f32 %v41, %v48
    %58 = vset.pattern.permute.xlu0 0
    %59 = vperm.xlu0 %58, %v26
    %v60 = vpop.permute.xlu0 %59
    %63 = vset.pattern.permute.xlu0 0
    %64 = vperm.xlu0 %63, %v27
    %v65 = vpop.permute.xlu0 %64
    %68 = vst [vmem:[#allocation1] ss:$4 sm:$0xff] %v30
    %v69 = vld.sshfl [vmem:[#allocation1] sm:$0xff pattern:$0x73625140]
    %v70 = vld.sshfl [vmem:[#allocation1 + $0x8] sm:$0xff pattern:$0x73625140]
    %v71 = vrot.slane %v69, 1
    %v72 = vrot.slane %v70, 1
    %v77 = vmul.f32 %v60, %v69
    %v78 = vmul.f32 %v60, %v70
    %v79 = vmul.f32 %v65, %v71
    %v80 = vmul.f32 %v65, %v72
    %v81 = vadd.f32 %v53, %v77
    %v82 = vadd.f32 %v54, %v78
    %v83 = vadd.f32 %v55, %v79
    %v84 = vadd.f32 %v56, %v80
    %s85 = scalar_lea.vmem %s2, 80
    %v86 = vld [vmem:[%s85] sm:$0xff]
    %v87 = vld [vmem:[%s85 + $0x8] sm:$0xff]
    %v88 = vld [vmem:[%s85 + $0x10] sm:$0xff]
    %v89 = vld [vmem:[%s85 + $0x18] sm:$0xff]
    %91 = vset.pattern.permute.xlu0 0
    %92 = vperm.xlu0 %91, %v86
    %v93 = vpop.permute.xlu0 %92
    %96 = vset.pattern.permute.xlu0 0
    %97 = vperm.xlu0 %96, %v87
    %v98 = vpop.permute.xlu0 %97
    %101 = vset.pattern.permute.xlu0 0
    %102 = vperm.xlu0 %101, %v88
    %v103 = vpop.permute.xlu0 %102
    %106 = vset.pattern.permute.xlu0 0
    %107 = vperm.xlu0 %106, %v89
    %v108 = vpop.permute.xlu0 %107
    %v110 = vperm.slane %v81, 0
    %v111 = vperm.slane %v82, 0
    %v112 = vperm.slane %v83, 0
    %v113 = vperm.slane %v84, 0
    %v114 = vmul.f32 %v93, %v110
    %v115 = vmul.f32 %v93, %v111
    %v116 = vmul.f32 %v98, %v110
    %v117 = vmul.f32 %v98, %v111
    %v118 = vmul.f32 %v103, %v110
    %v119 = vmul.f32 %v103, %v111
    %v120 = vmul.f32 %v108, %v110
    %v121 = vmul.f32 %v108, %v111
    %v122 = vmul.f32 %v93, %v112
    %v123 = vmul.f32 %v93, %v113
    %v124 = vmul.f32 %v98, %v112
    %v125 = vmul.f32 %v98, %v113
    %v126 = vmul.f32 %v103, %v112
    %v127 = vmul.f32 %v103, %v113
    %v128 = vmul.f32 %v108, %v112
    %v129 = vmul.f32 %v108, %v113
    %s130 = scalar_lea.vmem %s1, 4
    %v131 = vld [vmem:[%s130] sm:$0xf]
    %s132 = scalar_lea.vmem %s1, 16
    %v133 = vld [vmem:[%s132] sm:$0xf]
    %v134 = vmul.f32 %v131, 2.0
    %v135 = vsub.f32 %v134, 1.0
    %137 = vst [vmem:[#allocation1] ss:$4 sm:$0xff] %v135
    %v138 = vld.sshfl [vmem:[#allocation1] sm:$0xff pattern:$0x73625140]
    %v139 = vld.sshfl [vmem:[#allocation1 + $0x8] sm:$0xff pattern:$0x73625140]
    %v140 = vrot.slane %v138, 1
    %v141 = vrot.slane %v139, 1
    %v146 = vmul.f32 %v36, %v138
    %v147 = vmul.f32 %v36, %v139
    %v148 = vmul.f32 %v41, %v140
    %v149 = vmul.f32 %v41, %v141
    %151 = vst [vmem:[#allocation1] ss:$4 sm:$0xff] %v133
    %v152 = vld.sshfl [vmem:[#allocation1] sm:$0xff pattern:$0x73625140]
    %v153 = vld.sshfl [vmem:[#allocation1 + $0x8] sm:$0xff pattern:$0x73625140]
    %v154 = vrot.slane %v152, 1
    %v155 = vrot.slane %v153, 1
    %v160 = vmul.f32 %v60, %v152
    %v161 = vmul.f32 %v60, %v153
    %v162 = vmul.f32 %v65, %v154
    %v163 = vmul.f32 %v65, %v155
    %v164 = vadd.f32 %v146, %v160
    %v165 = vadd.f32 %v147, %v161
    %v166 = vadd.f32 %v148, %v162
    %v167 = vadd.f32 %v149, %v163
    %s168 = scalar_lea.vmem %s2, 120
    %v169 = vld [vmem:[%s168] sm:$0xff]
    %v170 = vld [vmem:[%s168 + $0x8] sm:$0xff]
    %v171 = vld [vmem:[%s168 + $0x10] sm:$0xff]
    %v172 = vld [vmem:[%s168 + $0x18] sm:$0xff]
    %174 = vset.pattern.permute.xlu0 0
    %175 = vperm.xlu0 %174, %v169
    %v176 = vpop.permute.xlu0 %175
    %179 = vset.pattern.permute.xlu0 0
    %180 = vperm.xlu0 %179, %v170
    %v181 = vpop.permute.xlu0 %180
    %184 = vset.pattern.permute.xlu0 0
    %185 = vperm.xlu0 %184, %v171
    %v186 = vpop.permute.xlu0 %185
    %189 = vset.pattern.permute.xlu0 0
    %190 = vperm.xlu0 %189, %v172
    %v191 = vpop.permute.xlu0 %190
    %v193 = vperm.slane %v164, 0
    %v194 = vperm.slane %v165, 0
    %v195 = vperm.slane %v166, 0
    %v196 = vperm.slane %v167, 0
    %v197 = vmul.f32 %v176, %v193
    %v198 = vmul.f32 %v176, %v194
    %v199 = vmul.f32 %v181, %v193
    %v200 = vmul.f32 %v181, %v194
    %v201 = vmul.f32 %v186, %v193
    %v202 = vmul.f32 %v186, %v194
    %v203 = vmul.f32 %v191, %v193
    %v204 = vmul.f32 %v191, %v194
    %v205 = vmul.f32 %v176, %v195
    %v206 = vmul.f32 %v176, %v196
    %v207 = vmul.f32 %v181, %v195
    %v208 = vmul.f32 %v181, %v196
    %v209 = vmul.f32 %v186, %v195
    %v210 = vmul.f32 %v186, %v196
    %v211 = vmul.f32 %v191, %v195
    %v212 = vmul.f32 %v191, %v196
    %v213 = vadd.f32 %v114, %v197
    %v214 = vadd.f32 %v115, %v198
    %v215 = vadd.f32 %v116, %v199
    %v216 = vadd.f32 %v117, %v200
    %v217 = vadd.f32 %v118, %v201
    %v218 = vadd.f32 %v119, %v202
    %v219 = vadd.f32 %v120, %v203
    %v220 = vadd.f32 %v121, %v204
    %v221 = vadd.f32 %v122, %v205
    %v222 = vadd.f32 %v123, %v206
    %v223 = vadd.f32 %v124, %v207
    %v224 = vadd.f32 %v125, %v208
    %v225 = vadd.f32 %v126, %v209
    %v226 = vadd.f32 %v127, %v210
    %v227 = vadd.f32 %v128, %v211
    %v228 = vadd.f32 %v129, %v212
    %s229 = scalar_lea.vmem %s1, 8
    %v230 = vld [vmem:[%s229] sm:$0xf]
    %s231 = scalar_lea.vmem %s1, 20
    %v232 = vld [vmem:[%s231] sm:$0xf]
    %v233 = vmul.f32 %v230, 2.0
    %v234 = vsub.f32 %v233, 1.0
    %236 = vst [vmem:[#allocation1] ss:$4 sm:$0xff] %v234
    %v237 = vld.sshfl [vmem:[#allocation1] sm:$0xff pattern:$0x73625140]
    %v238 = vld.sshfl [vmem:[#allocation1 + $0x8] sm:$0xff pattern:$0x73625140]
    %v239 = vrot.slane %v237, 1
    %v240 = vrot.slane %v238, 1
    %v245 = vmul.f32 %v36, %v237
    %v246 = vmul.f32 %v36, %v238
    %v247 = vmul.f32 %v41, %v239
    %v248 = vmul.f32 %v41, %v240
    %250 = vst [vmem:[#allocation1] ss:$4 sm:$0xff] %v232
    %v251 = vld.sshfl [vmem:[#allocation1] sm:$0xff pattern:$0x73625140]
    %v252 = vld.sshfl [vmem:[#allocation1 + $0x8] sm:$0xff pattern:$0x73625140]
    %v253 = vrot.slane %v251, 1
    %v254 = vrot.slane %v252, 1
    %v259 = vmul.f32 %v60, %v251
    %v260 = vmul.f32 %v60, %v252
    %v261 = vmul.f32 %v65, %v253
    %v262 = vmul.f32 %v65, %v254
    %v263 = vadd.f32 %v245, %v259
    %v264 = vadd.f32 %v246, %v260
    %v265 = vadd.f32 %v247, %v261
    %v266 = vadd.f32 %v248, %v262
    %s267 = scalar_lea.vmem %s2, 160
    %v268 = vld [vmem:[%s267] sm:$0xff]
    %v269 = vld [vmem:[%s267 + $0x8] sm:$0xff]
    %v270 = vld [vmem:[%s267 + $0x10] sm:$0xff]
    %v271 = vld [vmem:[%s267 + $0x18] sm:$0xff]
    %273 = vset.pattern.permute.xlu0 0
    %274 = vperm.xlu0 %273, %v268
    %v275 = vpop.permute.xlu0 %274
    %278 = vset.pattern.permute.xlu0 0
    %279 = vperm.xlu0 %278, %v269
    %v280 = vpop.permute.xlu0 %279
    %283 = vset.pattern.permute.xlu0 0
    %284 = vperm.xlu0 %283, %v270
    %v285 = vpop.permute.xlu0 %284
    %288 = vset.pattern.permute.xlu0 0
    %289 = vperm.xlu0 %288, %v271
    %v290 = vpop.permute.xlu0 %289
    %v292 = vperm.slane %v263, 0
    %v293 = vperm.slane %v264, 0
    %v294 = vperm.slane %v265, 0
    %v295 = vperm.slane %v266, 0
    %v296 = vmul.f32 %v275, %v292
    %v297 = vmul.f32 %v275, %v293
    %v298 = vmul.f32 %v280, %v292
    %v299 = vmul.f32 %v280, %v293
    %v300 = vmul.f32 %v285, %v292
    %v301 = vmul.f32 %v285, %v293
    %v302 = vmul.f32 %v290, %v292
    %v303 = vmul.f32 %v290, %v293
    %v304 = vmul.f32 %v275, %v294
    %v305 = vmul.f32 %v275, %v295
    %v306 = vmul.f32 %v280, %v294
    %v307 = vmul.f32 %v280, %v295
    %v308 = vmul.f32 %v285, %v294
    %v309 = vmul.f32 %v285, %v295
    %v310 = vmul.f32 %v290, %v294
    %v311 = vmul.f32 %v290, %v295
    %v312 = vadd.f32 %v213, %v296
    %v313 = vadd.f32 %v214, %v297
    %v314 = vadd.f32 %v215, %v298
    %v315 = vadd.f32 %v216, %v299
    %v316 = vadd.f32 %v217, %v300
    %v317 = vadd.f32 %v218, %v301
    %v318 = vadd.f32 %v219, %v302
    %v319 = vadd.f32 %v220, %v303
    %v320 = vadd.f32 %v221, %v304
    %v321 = vadd.f32 %v222, %v305
    %v322 = vadd.f32 %v223, %v306
    %v323 = vadd.f32 %v224, %v307
    %v324 = vadd.f32 %v225, %v308
    %v325 = vadd.f32 %v226, %v309
    %v326 = vadd.f32 %v227, %v310
    %v327 = vadd.f32 %v228, %v311
    %329 = vset.pattern.permute.xlu0 0
    %330 = vperm.xlu0 %329, %v16
    %v331 = vpop.permute.xlu0 %330
    %334 = vset.pattern.permute.xlu0 0
    %335 = vperm.xlu0 %334, %v17
    %v336 = vpop.permute.xlu0 %335
    %339 = vset.pattern.permute.xlu0 0
    %340 = vperm.xlu0 %339, %v18
    %v341 = vpop.permute.xlu0 %340
    %344 = vset.pattern.permute.xlu0 0
    %345 = vperm.xlu0 %344, %v19
    %v346 = vpop.permute.xlu0 %345
    %349 = vset.pattern.permute.xlu0 0
    %350 = vperm.xlu0 %349, %v20
    %v351 = vpop.permute.xlu0 %350
    %354 = vset.pattern.permute.xlu0 0
    %355 = vperm.xlu0 %354, %v21
    %v356 = vpop.permute.xlu0 %355
    %359 = vset.pattern.permute.xlu0 0
    %360 = vperm.xlu0 %359, %v22
    %v361 = vpop.permute.xlu0 %360
    %364 = vset.pattern.permute.xlu0 0
    %365 = vperm.xlu0 %364, %v23
    %v366 = vpop.permute.xlu0 %365
    %v368 = vadd.f32 %v312, %v331
    %v369 = vadd.f32 %v313, %v331
    %v370 = vadd.f32 %v314, %v336
    %v371 = vadd.f32 %v315, %v336
    %v372 = vadd.f32 %v316, %v341
    %v373 = vadd.f32 %v317, %v341
    %v374 = vadd.f32 %v318, %v346
    %v375 = vadd.f32 %v319, %v346
    %v376 = vadd.f32 %v320, %v351
    %v377 = vadd.f32 %v321, %v351
    %v378 = vadd.f32 %v322, %v356
    %v379 = vadd.f32 %v323, %v356
    %v380 = vadd.f32 %v324, %v361
    %v381 = vadd.f32 %v325, %v361
    %v382 = vadd.f32 %v326, %v366
    %v383 = vadd.f32 %v327, %v366
    %v384 = vmul.f32 %v368, %v368
    %v385 = vmul.f32 %v369, %v369
    %v386 = vmul.f32 %v370, %v370
    %v387 = vmul.f32 %v371, %v371
    %v388 = vmul.f32 %v372, %v372
    %v389 = vmul.f32 %v373, %v373
    %v390 = vmul.f32 %v374, %v374
    %v391 = vmul.f32 %v375, %v375
    %v392 = vmul.f32 %v376, %v376
    %v393 = vmul.f32 %v377, %v377
    %v394 = vmul.f32 %v378, %v378
    %v395 = vmul.f32 %v379, %v379
    %v396 = vmul.f32 %v380, %v380
    %v397 = vmul.f32 %v381, %v381
    %v398 = vmul.f32 %v382, %v382
    %v399 = vmul.f32 %v383, %v383
    %v400 = vmul.f32 %v368, %v384
    %v401 = vmul.f32 %v369, %v385
    %v402 = vmul.f32 %v370, %v386
    %v403 = vmul.f32 %v371, %v387
    %v404 = vmul.f32 %v372, %v388
    %v405 = vmul.f32 %v373, %v389
    %v406 = vmul.f32 %v374, %v390
    %v407 = vmul.f32 %v375, %v391
    %v408 = vmul.f32 %v376, %v392
    %v409 = vmul.f32 %v377, %v393
    %v410 = vmul.f32 %v378, %v394
    %v411 = vmul.f32 %v379, %v395
    %v412 = vmul.f32 %v380, %v396
    %v413 = vmul.f32 %v381, %v397
    %v414 = vmul.f32 %v382, %v398
    %v415 = vmul.f32 %v383, %v399
    %v416 = vmul.f32 %v400, 0.044715
    %v417 = vmul.f32 %v401, 0.044715
    %v418 = vmul.f32 %v402, 0.044715
    %v419 = vmul.f32 %v403, 0.044715
    %v420 = vmul.f32 %v404, 0.044715
    %v421 = vmul.f32 %v405, 0.044715
    %v422 = vmul.f32 %v406, 0.044715
    %v423 = vmul.f32 %v407, 0.044715
    %v424 = vmul.f32 %v408, 0.044715
    %v425 = vmul.f32 %v409, 0.044715
    %v426 = vmul.f32 %v410, 0.044715
    %v427 = vmul.f32 %v411, 0.044715
    %v428 = vmul.f32 %v412, 0.044715
    %v429 = vmul.f32 %v413, 0.044715
    %v430 = vmul.f32 %v414, 0.044715
    %v431 = vmul.f32 %v415, 0.044715
    %v432 = vadd.f32 %v368, %v416
    %v433 = vadd.f32 %v369, %v417
    %v434 = vadd.f32 %v370, %v418
    %v435 = vadd.f32 %v371, %v419
    %v436 = vadd.f32 %v372, %v420
    %v437 = vadd.f32 %v373, %v421
    %v438 = vadd.f32 %v374, %v422
    %v439 = vadd.f32 %v375, %v423
    %v440 = vadd.f32 %v376, %v424
    %v441 = vadd.f32 %v377, %v425
    %v442 = vadd.f32 %v378, %v426
    %v443 = vadd.f32 %v379, %v427
    %v444 = vadd.f32 %v380, %v428
    %v445 = vadd.f32 %v381, %v429
    %v446 = vadd.f32 %v382, %v430
    %v447 = vadd.f32 %v383, %v431
    %v448 = vmul.f32 %v432, 0.7978846
    %v449 = vmul.f32 %v433, 0.7978846
    %v450 = vmul.f32 %v434, 0.7978846
    %v451 = vmul.f32 %v435, 0.7978846
    %v452 = vmul.f32 %v436, 0.7978846
    %v453 = vmul.f32 %v437, 0.7978846
    %v454 = vmul.f32 %v438, 0.7978846
    %v455 = vmul.f32 %v439, 0.7978846
    %v456 = vmul.f32 %v440, 0.7978846
    %v457 = vmul.f32 %v441, 0.7978846
    %v458 = vmul.f32 %v442, 0.7978846
    %v459 = vmul.f32 %v443, 0.7978846
    %v460 = vmul.f32 %v444, 0.7978846
    %v461 = vmul.f32 %v445, 0.7978846
    %v462 = vmul.f32 %v446, 0.7978846
    %v463 = vmul.f32 %v447, 0.7978846
    %v464 = vtanh.pop %v448
    %v465 = vtanh.pop %v449
    %v466 = vtanh.pop %v450
    %v467 = vtanh.pop %v451
    %v468 = vtanh.pop %v452
    %v469 = vtanh.pop %v453
    %v470 = vtanh.pop %v454
    %v471 = vtanh.pop %v455
    %v472 = vtanh.pop %v456
    %v473 = vtanh.pop %v457
    %v474 = vtanh.pop %v458
    %v475 = vtanh.pop %v459
    %v476 = vtanh.pop %v460
    %v477 = vtanh.pop %v461
    %v478 = vtanh.pop %v462
    %v479 = vtanh.pop %v463
    %v480 = vadd.f32 %v464, 1.0
    %v481 = vadd.f32 %v465, 1.0
    %v482 = vadd.f32 %v466, 1.0
    %v483 = vadd.f32 %v467, 1.0
    %v484 = vadd.f32 %v468, 1.0
    %v485 = vadd.f32 %v469, 1.0
    %v486 = vadd.f32 %v470, 1.0
    %v487 = vadd.f32 %v471, 1.0
    %v488 = vadd.f32 %v472, 1.0
    %v489 = vadd.f32 %v473, 1.0
    %v490 = vadd.f32 %v474, 1.0
    %v491 = vadd.f32 %v475, 1.0
    %v492 = vadd.f32 %v476, 1.0
    %v493 = vadd.f32 %v477, 1.0
    %v494 = vadd.f32 %v478, 1.0
    %v495 = vadd.f32 %v479, 1.0
    %v496 = vmul.f32 %v480, 0.5
    %v497 = vmul.f32 %v481, 0.5
    %v498 = vmul.f32 %v482, 0.5
    %v499 = vmul.f32 %v483, 0.5
    %v500 = vmul.f32 %v484, 0.5
    %v501 = vmul.f32 %v485, 0.5
    %v502 = vmul.f32 %v486, 0.5
    %v503 = vmul.f32 %v487, 0.5
    %v504 = vmul.f32 %v488, 0.5
    %v505 = vmul.f32 %v489, 0.5
    %v506 = vmul.f32 %v490, 0.5
    %v507 = vmul.f32 %v491, 0.5
    %v508 = vmul.f32 %v492, 0.5
    %v509 = vmul.f32 %v493, 0.5
    %v510 = vmul.f32 %v494, 0.5
    %v511 = vmul.f32 %v495, 0.5
    %v512 = vmul.f32 %v368, %v496
    %v513 = vmul.f32 %v369, %v497
    %v514 = vmul.f32 %v370, %v498
    %v515 = vmul.f32 %v371, %v499
    %v516 = vmul.f32 %v372, %v500
    %v517 = vmul.f32 %v373, %v501
    %v518 = vmul.f32 %v374, %v502
    %v519 = vmul.f32 %v375, %v503
    %v520 = vmul.f32 %v376, %v504
    %v521 = vmul.f32 %v377, %v505
    %v522 = vmul.f32 %v378, %v506
    %v523 = vmul.f32 %v379, %v507
    %v524 = vmul.f32 %v380, %v508
    %v525 = vmul.f32 %v381, %v509
    %v526 = vmul.f32 %v382, %v510
    %v527 = vmul.f32 %v383, %v511
    %s528 = scalar_lea.vmem %s2, 200
    %v529 = vld [vmem:[%s528] sm:$0xff]
    %v530 = vld [vmem:[%s528 + $0x8] sm:$0xff]
    %v531 = vld [vmem:[%s528 + $0x10] sm:$0xff]
    %v532 = vld [vmem:[%s528 + $0x18] sm:$0xff]
    %534 = vset.pattern.permute.xlu0 0
    %535 = vperm.xlu0 %534, %v529
    %v536 = vpop.permute.xlu0 %535
    %539 = vset.pattern.permute.xlu0 0
    %540 = vperm.xlu0 %539, %v530
    %v541 = vpop.permute.xlu0 %540
    %544 = vset.pattern.permute.xlu0 0
    %545 = vperm.xlu0 %544, %v531
    %v546 = vpop.permute.xlu0 %545
    %549 = vset.pattern.permute.xlu0 0
    %550 = vperm.xlu0 %549, %v532
    %v551 = vpop.permute.xlu0 %550
    %v553 = vmul.f32 %v536, %v512
    %v554 = vmul.f32 %v536, %v513
    %v555 = vmul.f32 %v541, %v514
    %v556 = vmul.f32 %v541, %v515
    %v557 = vmul.f32 %v546, %v516
    %v558 = vmul.f32 %v546, %v517
    %v559 = vmul.f32 %v551, %v518
    %v560 = vmul.f32 %v551, %v519
    %v561 = vmul.f32 %v536, %v520
    %v562 = vmul.f32 %v536, %v521
    %v563 = vmul.f32 %v541, %v522
    %v564 = vmul.f32 %v541, %v523
    %v565 = vmul.f32 %v546, %v524
    %v566 = vmul.f32 %v546, %v525
    %v567 = vmul.f32 %v551, %v526
    %v568 = vmul.f32 %v551, %v527
    %v569 = vadd.f32 %v553, %v555
    %v570 = vadd.f32 %v569, %v557
    %v571 = vadd.f32 %v570, %v559
    %v572 = vrot.slane %v571, 4
    %v573 = vadd.f32 %v571, %v572
    %v574 = vrot.slane %v573, 2
    %v575 = vadd.f32 %v573, %v574
    %v576 = vrot.slane %v575, 1
    %v577 = vadd.f32 %v575, %v576
    %v578 = vadd.f32 %v554, %v556
    %v579 = vadd.f32 %v578, %v558
    %v580 = vadd.f32 %v579, %v560
    %v581 = vrot.slane %v580, 4
    %v582 = vadd.f32 %v580, %v581
    %v583 = vrot.slane %v582, 2
    %v584 = vadd.f32 %v582, %v583
    %v585 = vrot.slane %v584, 1
    %v586 = vadd.f32 %v584, %v585
    %v587 = vadd.f32 %v561, %v563
    %v588 = vadd.f32 %v587, %v565
    %v589 = vadd.f32 %v588, %v567
    %v590 = vrot.slane %v589, 4
    %v591 = vadd.f32 %v589, %v590
    %v592 = vrot.slane %v591, 2
    %v593 = vadd.f32 %v591, %v592
    %v594 = vrot.slane %v593, 1
    %v595 = vadd.f32 %v593, %v594
    %v596 = vadd.f32 %v562, %v564
    %v597 = vadd.f32 %v596, %v566
    %v598 = vadd.f32 %v597, %v568
    %v599 = vrot.slane %v598, 4
    %v600 = vadd.f32 %v598, %v599
    %v601 = vrot.slane %v600, 2
    %v602 = vadd.f32 %v600, %v601
    %v603 = vrot.slane %v602, 1
    %v604 = vadd.f32 %v602, %v603
    %605 = vst [vmem:[#allocation1] ss:$4 sm:$0xff] %v30
    %v606 = vld.sshfl [vmem:[#allocation1] sm:$0xff pattern:$0x73625140]
    %v607 = vld.sshfl [vmem:[#allocation1 + $0x8] sm:$0xff pattern:$0x73625140]
    %v608 = vrot.slane %v606, 1
    %v609 = vrot.slane %v607, 1
    %v614 = vsub.f32 %v577, %v606
    %v615 = vsub.f32 %v586, %v607
    %v616 = vsub.f32 %v595, %v608
    %v617 = vsub.f32 %v604, %v609
    %v618 = vmul.f32 %v614, %v614
    %v619 = vmul.f32 %v615, %v615
    %v620 = vmul.f32 %v616, %v616
    %v621 = vmul.f32 %v617, %v617
    %s622 = scalar_lea.vmem %s2, 240
    %v623 = vld [vmem:[%s622] sm:$0xff]
    %v624 = vld [vmem:[%s622 + $0x8] sm:$0xff]
    %v625 = vld [vmem:[%s622 + $0x10] sm:$0xff]
    %v626 = vld [vmem:[%s622 + $0x18] sm:$0xff]
    %628 = vset.pattern.permute.xlu0 0
    %629 = vperm.xlu0 %628, %v623
    %v630 = vpop.permute.xlu0 %629
    %633 = vset.pattern.permute.xlu0 0
    %634 = vperm.xlu0 %633, %v624
    %v635 = vpop.permute.xlu0 %634
    %638 = vset.pattern.permute.xlu0 0
    %639 = vperm.xlu0 %638, %v625
    %v640 = vpop.permute.xlu0 %639
    %643 = vset.pattern.permute.xlu0 0
    %644 = vperm.xlu0 %643, %v626
    %v645 = vpop.permute.xlu0 %644
    %v647 = vmul.f32 %v630, %v512
    %v648 = vmul.f32 %v630, %v513
    %v649 = vmul.f32 %v635, %v514
    %v650 = vmul.f32 %v635, %v515
    %v651 = vmul.f32 %v640, %v516
    %v652 = vmul.f32 %v640, %v517
    %v653 = vmul.f32 %v645, %v518
    %v654 = vmul.f32 %v645, %v519
    %v655 = vmul.f32 %v630, %v520
    %v656 = vmul.f32 %v630, %v521
    %v657 = vmul.f32 %v635, %v522
    %v658 = vmul.f32 %v635, %v523
    %v659 = vmul.f32 %v640, %v524
    %v660 = vmul.f32 %v640, %v525
    %v661 = vmul.f32 %v645, %v526
    %v662 = vmul.f32 %v645, %v527
    %v663 = vadd.f32 %v647, %v649
    %v664 = vadd.f32 %v663, %v651
    %v665 = vadd.f32 %v664, %v653
    %v666 = vrot.slane %v665, 4
    %v667 = vadd.f32 %v665, %v666
    %v668 = vrot.slane %v667, 2
    %v669 = vadd.f32 %v667, %v668
    %v670 = vrot.slane %v669, 1
    %v671 = vadd.f32 %v669, %v670
    %v672 = vadd.f32 %v648, %v650
    %v673 = vadd.f32 %v672, %v652
    %v674 = vadd.f32 %v673, %v654
    %v675 = vrot.slane %v674, 4
    %v676 = vadd.f32 %v674, %v675
    %v677 = vrot.slane %v676, 2
    %v678 = vadd.f32 %v676, %v677
    %v679 = vrot.slane %v678, 1
    %v680 = vadd.f32 %v678, %v679
    %v681 = vadd.f32 %v655, %v657
    %v682 = vadd.f32 %v681, %v659
    %v683 = vadd.f32 %v682, %v661
    %v684 = vrot.slane %v683, 4
    %v685 = vadd.f32 %v683, %v684
    %v686 = vrot.slane %v685, 2
    %v687 = vadd.f32 %v685, %v686
    %v688 = vrot.slane %v687, 1
    %v689 = vadd.f32 %v687, %v688
    %v690 = vadd.f32 %v656, %v658
    %v691 = vadd.f32 %v690, %v660
    %v692 = vadd.f32 %v691, %v662
    %v693 = vrot.slane %v692, 4
    %v694 = vadd.f32 %v692, %v693
    %v695 = vrot.slane %v694, 2
    %v696 = vadd.f32 %v694, %v695
    %v697 = vrot.slane %v696, 1
    %v698 = vadd.f32 %v696, %v697
    %699 = vst [vmem:[#allocation1] ss:$4 sm:$0xff] %v133
    %v700 = vld.sshfl [vmem:[#allocation1] sm:$0xff pattern:$0x73625140]
    %v701 = vld.sshfl [vmem:[#allocation1 + $0x8] sm:$0xff pattern:$0x73625140]
    %v702 = vrot.slane %v700, 1
    %v703 = vrot.slane %v701, 1
    %v708 = vsub.f32 %v671, %v700
    %v709 = vsub.f32 %v680, %v701
    %v710 = vsub.f32 %v689, %v702
    %v711 = vsub.f32 %v698, %v703
    %v712 = vmul.f32 %v708, %v708
    %v713 = vmul.f32 %v709, %v709
    %v714 = vmul.f32 %v710, %v710
    %v715 = vmul.f32 %v711, %v711
    %v716 = vadd.f32 %v618, %v712
    %v717 = vadd.f32 %v619, %v713
    %v718 = vadd.f32 %v620, %v714
    %v719 = vadd.f32 %v621, %v715
    %s720 = scalar_lea.vmem %s2, 280
    %v721 = vld [vmem:[%s720] sm:$0xff]
    %v722 = vld [vmem:[%s720 + $0x8] sm:$0xff]
    %v723 = vld [vmem:[%s720 + $0x10] sm:$0xff]
    %v724 = vld [vmem:[%s720 + $0x18] sm:$0xff]
    %726 = vset.pattern.permute.xlu0 0
    %727 = vperm.xlu0 %726, %v721
    %v728 = vpop.permute.xlu0 %727
    %731 = vset.pattern.permute.xlu0 0
    %732 = vperm.xlu0 %731, %v722
    %v733 = vpop.permute.xlu0 %732
    %736 = vset.pattern.permute.xlu0 0
    %737 = vperm.xlu0 %736, %v723
    %v738 = vpop.permute.xlu0 %737
    %741 = vset.pattern.permute.xlu0 0
    %742 = vperm.xlu0 %741, %v724
    %v743 = vpop.permute.xlu0 %742
    %v745 = vmul.f32 %v728, %v512
    %v746 = vmul.f32 %v728, %v513
    %v747 = vmul.f32 %v733, %v514
    %v748 = vmul.f32 %v733, %v515
    %v749 = vmul.f32 %v738, %v516
    %v750 = vmul.f32 %v738, %v517
    %v751 = vmul.f32 %v743, %v518
    %v752 = vmul.f32 %v743, %v519
    %v753 = vmul.f32 %v728, %v520
    %v754 = vmul.f32 %v728, %v521
    %v755 = vmul.f32 %v733, %v522
    %v756 = vmul.f32 %v733, %v523
    %v757 = vmul.f32 %v738, %v524
    %v758 = vmul.f32 %v738, %v525
    %v759 = vmul.f32 %v743, %v526
    %v760 = vmul.f32 %v743, %v527
    %v761 = vadd.f32 %v745, %v747
    %v762 = vadd.f32 %v761, %v749
    %v763 = vadd.f32 %v762, %v751
    %v764 = vrot.slane %v763, 4
    %v765 = vadd.f32 %v763, %v764
    %v766 = vrot.slane %v765, 2
    %v767 = vadd.f32 %v765, %v766
    %v768 = vrot.slane %v767, 1
    %v769 = vadd.f32 %v767, %v768
    %v770 = vadd.f32 %v746, %v748
    %v771 = vadd.f32 %v770, %v750
    %v772 = vadd.f32 %v771, %v752
    %v773 = vrot.slane %v772, 4
    %v774 = vadd.f32 %v772, %v773
    %v775 = vrot.slane %v774, 2
    %v776 = vadd.f32 %v774, %v775
    %v777 = vrot.slane %v776, 1
    %v778 = vadd.f32 %v776, %v777
    %v779 = vadd.f32 %v753, %v755
    %v780 = vadd.f32 %v779, %v757
    %v781 = vadd.f32 %v780, %v759
    %v782 = vrot.slane %v781, 4
    %v783 = vadd.f32 %v781, %v782
    %v784 = vrot.slane %v783, 2
    %v785 = vadd.f32 %v783, %v784
    %v786 = vrot.slane %v785, 1
    %v787 = vadd.f32 %v785, %v786
    %v788 = vadd.f32 %v754, %v756
    %v789 = vadd.f32 %v788, %v758
    %v790 = vadd.f32 %v789, %v760
    %v791 = vrot.slane %v790, 4
    %v792 = vadd.f32 %v790, %v791
    %v793 = vrot.slane %v792, 2
    %v794 = vadd.f32 %v792, %v793
    %v795 = vrot.slane %v794, 1
    %v796 = vadd.f32 %v794, %v795
    %797 = vst [vmem:[#allocation1] ss:$4 sm:$0xff] %v232
    %v798 = vld.sshfl [vmem:[#allocation1] sm:$0xff pattern:$0x73625140]
    %v799 = vld.sshfl [vmem:[#allocation1 + $0x8] sm:$0xff pattern:$0x73625140]
    %v800 = vrot.slane %v798, 1
    %v801 = vrot.slane %v799, 1
    %v806 = vsub.f32 %v769, %v798
    %v807 = vsub.f32 %v778, %v799
    %v808 = vsub.f32 %v787, %v800
    %v809 = vsub.f32 %v796, %v801
    %v810 = vmul.f32 %v806, %v806
    %v811 = vmul.f32 %v807, %v807
    %v812 = vmul.f32 %v808, %v808
    %v813 = vmul.f32 %v809, %v809
    %v814 = vadd.f32 %v716, %v810
    %v815 = vadd.f32 %v717, %v811
    %v816 = vadd.f32 %v718, %v812
    %v817 = vadd.f32 %v719, %v813
    %v822 = vrot.slane %v816, 7
    %vm823 = vcmask 1041409
    %v824 = vsel %vm823, %v822, %v814
    %v825 = vrot.slane %v817, 7
    %v826 = vsel %vm823, %v825, %v815
    %vm829 = vcmask 1041408
    %v830 = vsel %vm829, %v824, 0.0
    %v831 = vsel %vm829, %v826, 0.0
    %v832 = vadd.f32 %v830, %v831
    %833 = vadd.xlane.f32.xlu0 %v832
    %v834 = vpop.xlane.xlu0 %833
    %v835 = vrot.slane %v834, 4
    %v836 = vadd.f32 %v834, %v835
    %v837 = vrot.slane %v836, 2
    %v838 = vadd.f32 %v836, %v837
    %v839 = vrot.slane %v838, 1
    %v840 = vadd.f32 %v838, %v839
    %s841 = vtos %v840
    %s842 = smul.f32 %s841, 0.0006510417
    %s843 = scalar_lea.smem [#allocation3], 0
    %844 = sst [smem:[%s843]] %s842
    // Predicated region
    $region14: #{imagen_forward.3} parent=1 // pred_check
      _
    $region15: #{imagen_forward.3} parent=1 // pred_check_branch
      %846 = sbr.rel (0) target = $region17
    $region16: #{imagen_forward.3} parent=1 // pred_region
      %848 = vsyncadd [#allocation4], 0
      %s850 = sshll.u32 %s3, 4
      %s851 = int_to_ptr.hbm [resolvable:$true] %s850
      %853 = dma.smem_to_hbm [#allocation3], 16, %s851, [#allocation4]
    $region17: #{imagen_forward.3} parent=1 // pred_fallthru
      _
    // Predicated region
    $region18: #{imagen_forward.3} parent=1 // pred_check
      _
    $region19: #{imagen_forward.3} parent=1 // pred_check_branch
      %855 = sbr.rel (0) target = $region21
    $region20: #{imagen_forward.3} parent=1 // pred_region
      %857 = dma.done [#allocation4], 16
    $region21: #{imagen_forward.3} parent=1 // pred_fallthru
      _
    %858 = sfence
    %859 = vsyncpa [#allocation4], 1

</llo_original>
